<compile_context>
chip_gen: v7x
topology: tpu7x:2x2x1
jax: 0.10.0
libtpu: 0.0.40
codegen_flags: <defaults>
</compile_context>

<pallas_src>
import functools

import jax
import jax.numpy as jnp
from jax.experimental import pallas as pl
from jax.experimental.pallas import tpu as pltpu

_EPS = 1e-8


def _round_up(x, m):
    return ((x + m - 1) // m) * m


def _vmem_capacity_bytes():
    try:
        return int(pltpu.get_tpu_info().vmem_capacity_bytes)
    except Exception:
        return 64 * 1024 * 1024  # conservative (v7x-sized) fallback


def _spex_loss_kernel(blk_min_ref,                      # scalar prefetch (SMEM)
                      s1_ref, s2_ref, s3_ref, tgt_ref,  # (TB, TT) audio tiles
                      logits_ref, len_ref, tid_ref,     # (TB, C), (TB,1), (TB,1)
                      out_ref,                          # (TB, 8)
                      acc_ref,                          # (TB, 16) VMEM scratch
                      *, total_t):
    b_idx = pl.program_id(0)
    t_idx = pl.program_id(1)
    n_t = pl.num_programs(1)
    TB, TT = s1_ref.shape

    @pl.when(t_idx == 0)
    def _():
        acc_ref[...] = jnp.zeros_like(acc_ref)

    def rsum(v):
        return jnp.sum(v, axis=-1, keepdims=True)       # (TB, 1)

    def accumulate(s, x1, x2, x3):
        # 11 running sums, written straight into scratch columns (no concat).
        acc_ref[:, 0:1] += rsum(s)
        acc_ref[:, 1:2] += rsum(s * s)
        acc_ref[:, 2:3] += rsum(x1)
        acc_ref[:, 3:4] += rsum(x1 * x1)
        acc_ref[:, 4:5] += rsum(x1 * s)
        acc_ref[:, 5:6] += rsum(x2)
        acc_ref[:, 6:7] += rsum(x2 * x2)
        acc_ref[:, 7:8] += rsum(x2 * s)
        acc_ref[:, 8:9] += rsum(x3)
        acc_ref[:, 9:10] += rsum(x3 * x3)
        acc_ref[:, 10:11] += rsum(x3 * s)

    # Fast path: every (valid) row in this B block fully covers this T tile.
    fully_valid = (t_idx + 1) * TT <= blk_min_ref[b_idx]

    @pl.when(fully_valid)
    def _():
        accumulate(tgt_ref[...].astype(jnp.float32),
                   s1_ref[...].astype(jnp.float32),
                   s2_ref[...].astype(jnp.float32),
                   s3_ref[...].astype(jnp.float32))

    @pl.when(jnp.logical_not(fully_valid))
    def _():
        # mask_by_length (fill=0) for this tile; block-local iota, per-row
        # remaining-length computed once (TB,1).
        rem = len_ref[...] - t_idx * TT                              # (TB, 1)
        lane = jax.lax.broadcasted_iota(jnp.int32, (TB, TT), 1)
        mask = lane < rem

        def lm(ref):
            return jnp.where(mask, ref[...].astype(jnp.float32), 0.0)

        accumulate(lm(tgt_ref), lm(s1_ref), lm(s2_ref), lm(s3_ref))

    # ---- epilogue: combine sufficient statistics, CE, argmax ----
    @pl.when(t_idx == n_t - 1)
    def _():
        acc = acc_ref[...]
        inv_T = 1.0 / float(total_t)                     # mean over full T (matches ref)
        s_sum, s2_sum = acc[:, 0:1], acc[:, 1:2]
        s_pow = s2_sum - s_sum * s_sum * inv_T           # ||s_zm||^2
        inv_sp = 1.0 / (s_pow + _EPS)

        def sisdr(x_sum, x2_sum, xs_sum):
            x_pow = x2_sum - x_sum * x_sum * inv_T       # ||x_zm||^2
            dot = xs_sum - x_sum * s_sum * inv_T         # <x_zm, s_zm>
            d2 = dot * dot
            t_sq = d2 * s_pow * inv_sp * inv_sp          # ||t||^2
            e_sq = x_pow - 2.0 * d2 * inv_sp + t_sq      # ||x_zm - t||^2
            t_norm = jnp.sqrt(jnp.maximum(t_sq, 0.0))
            e_norm = jnp.sqrt(jnp.maximum(e_sq, 0.0))
            return 20.0 * jnp.log10(_EPS + t_norm / (e_norm + _EPS))

        snr1 = sisdr(acc[:, 2:3], acc[:, 3:4], acc[:, 4:5])
        snr2 = sisdr(acc[:, 5:6], acc[:, 6:7], acc[:, 7:8])
        snr3 = sisdr(acc[:, 8:9], acc[:, 9:10], acc[:, 10:11])

        # ---- cross entropy + speaker-accuracy indicator ----
        logits = logits_ref[...].astype(jnp.float32)     # (TB, C)
        C = logits.shape[-1]
        m = jnp.max(logits, axis=-1, keepdims=True)
        z = logits - m
        lse = jnp.log(jnp.sum(jnp.exp(z), axis=-1, keepdims=True))
        tids = tid_ref[...]                              # (TB, 1) int32
        c_iota = jax.lax.broadcasted_iota(jnp.int32, logits.shape, 1)
        onehot = (c_iota == tids).astype(jnp.float32)
        z_tgt = jnp.sum(z * onehot, axis=-1, keepdims=True)
        ce = lse - z_tgt                                 # per-row NLL

        # argmax with first-occurrence tie-break (reuse row max m)
        is_max = logits == m
        first_max = jnp.min(jnp.where(is_max, c_iota, C), axis=-1, keepdims=True)
        corr = (first_max == tids).astype(jnp.float32)

        out_ref[...] = jnp.concatenate(
            [snr1, snr2, snr3, ce, corr, jnp.zeros((TB, 3), jnp.float32)],
            axis=-1)                                     # single (TB, 8) store


def spex_plus_loss(pred_values, batch, *, max_tt=None):
    logits = pred_values['logits']                       # (B, C) native dtype
    s1 = pred_values['s1'][:, 0, :]                      # (B, T)
    s2 = pred_values['s2'][:, 0, :]
    s3 = pred_values['s3'][:, 0, :]
    tgt = batch['audio_tgt'][:, 0, :]
    B, T = s1.shape
    C = logits.shape[-1]

    lens = batch['len_tgt'].astype(jnp.int32).reshape(B)
    len2d = lens.reshape(B, 1)
    tid2d = batch['target_id'].astype(jnp.int32).reshape(B, 1)

    # ---- tile sizes ----
    # Small TB (vreg pressure + >=2 parallel B blocks for v7x megacore);
    # sub-32-bit audio needs a 16-row minimum tile.
    itemsizes = [jnp.dtype(a.dtype).itemsize for a in (s1, s2, s3, tgt)]
    TB = 16 if min(itemsizes) < 4 else 8

    # Large, VMEM-aware TT: cap the double-buffered working set of the 4 audio
    # streams well under physical VMEM (v7x 64 MiB, v5e/v6e 128 MiB).
    vmem_cap = _vmem_capacity_bytes()
    budget = min(int(vmem_cap * 0.6), 64 * 1024 * 1024)
    per_tt_bytes = 2 * TB * sum(itemsizes)               # 2 buffers x 4 streams
    tt_cap = max((budget // per_tt_bytes) // 128 * 128, 8192)
    TT = min(_round_up(T, 128), tt_cap)
    if max_tt is not None:                               # testing hook (forces multi-tile T)
        TT = min(TT, _round_up(max_tt, 128))

    nb = pl.cdiv(B, TB)
    grid = (nb, pl.cdiv(T, TT))

    # Per-B-block minimum valid length (valid rows only) for the unmasked fast path.
    pad_rows = nb * TB - B
    lens_padded = jnp.pad(lens, (0, pad_rows),
                          constant_values=jnp.iinfo(jnp.int32).max)
    blk_min = jnp.min(lens_padded.reshape(nb, TB), axis=1).astype(jnp.int32)

    audio_spec = pl.BlockSpec((TB, TT), lambda b, t, bm: (b, t))
    row_spec = pl.BlockSpec((TB, 1), lambda b, t, bm: (b, 0))
    logits_spec = pl.BlockSpec((TB, C), lambda b, t, bm: (b, 0))

    working_set = per_tt_bytes * TT + (8 << 20)          # + headroom for small operands
    vmem_limit = max(16 << 20, min(int(vmem_cap * 0.9), working_set))

    out = pl.pallas_call(
        functools.partial(_spex_loss_kernel, total_t=T),
        out_shape=jax.ShapeDtypeStruct((B, 8), jnp.float32),
        grid_spec=pltpu.PrefetchScalarGridSpec(
            num_scalar_prefetch=1,
            grid=grid,
            in_specs=[audio_spec, audio_spec, audio_spec, audio_spec,
                      logits_spec, row_spec, row_spec],
            out_specs=pl.BlockSpec((TB, 8), lambda b, t, bm: (b, 0)),
            scratch_shapes=[pltpu.VMEM((TB, 16), jnp.float32)],
        ),
        compiler_params=pltpu.CompilerParams(
            dimension_semantics=("parallel", "arbitrary"),
            vmem_limit_bytes=vmem_limit,
        ),
    )(blk_min, s1, s2, s3, tgt, logits, len2d, tid2d)

    # Tiny O(B) scalar combination (glue).
    snr_loss = (-0.8 * jnp.sum(out[:, 0])
                - 0.1 * jnp.sum(out[:, 1])
                - 0.1 * jnp.sum(out[:, 2])) / B
    ce_loss = jnp.mean(out[:, 3])
    correct = jnp.sum(out[:, 4]) / B
    loss = snr_loss + 0.5 * ce_loss
    return {'loss': loss, 'ce_loss': ce_loss, 'si_sdr': snr_loss,
            'correct_speakers': correct}


# ---------------- pure-JAX reference (for verification only) ----------------
def _ref_sisdr(x, s, eps=_EPS):
    x_zm = x - jnp.mean(x, axis=-1, keepdims=True)
    s_zm = s - jnp.mean(s, axis=-1, keepdims=True)
    t = (jnp.sum(x_zm * s_zm, axis=-1, keepdims=True) * s_zm
         / (jnp.sum(s_zm * s_zm, axis=-1, keepdims=True) + eps))
    l2 = lambda m: jnp.sqrt(jnp.sum(m * m, axis=-1))
    return 20.0 * jnp.log10(eps + l2(t) / (l2(x_zm - t) + eps))


def _ref_loss(pred_values, batch):
    logits = pred_values['logits'].astype(jnp.float32)
    B, T = pred_values['s1'].shape[0], pred_values['s1'].shape[-1]
    mask = (jnp.arange(T)[None, :] < batch['len_tgt'][:, None]).astype(jnp.float32)
    s1 = pred_values['s1'][:, 0, :].astype(jnp.float32) * mask
    s2 = pred_values['s2'][:, 0, :].astype(jnp.float32) * mask
    s3 = pred_values['s3'][:, 0, :].astype(jnp.float32) * mask
    tgt = batch['audio_tgt'][:, 0, :].astype(jnp.float32) * mask
    snr_loss = (-0.8 * jnp.sum(_ref_sisdr(s1, tgt))
                - 0.1 * jnp.sum(_ref_sisdr(s2, tgt))
                - 0.1 * jnp.sum(_ref_sisdr(s3, tgt))) / B
    logz = jax.nn.log_softmax(logits, axis=-1)
    ce = -jnp.mean(logz[jnp.arange(B), batch['target_id']])
    correct = jnp.mean((jnp.argmax(logits, axis=-1) == batch['target_id'])
                       .astype(jnp.float32))
    return {'loss': snr_loss + 0.5 * ce, 'ce_loss': ce, 'si_sdr': snr_loss,
            'correct_speakers': correct}


if __name__ == "__main__":
    def make_inputs(key, B, T, C, lengths, tids):
        k1, k2, k3, k4, k5 = jax.random.split(key, 5)
        pred_values = {
            'logits': jax.random.normal(k1, (B, C), dtype=jnp.float32),
            's1': jax.random.normal(k2, (B, 1, T), dtype=jnp.float32),
            's2': jax.random.normal(k3, (B, 1, T), dtype=jnp.float32),
            's3': jax.random.normal(k4, (B, 1, T), dtype=jnp.float32),
        }
        batch = {
            'audio_tgt': jax.random.normal(k5, (B, 1, T), dtype=jnp.float32),
            'len_tgt': jnp.array(lengths, dtype=jnp.int32),
            'target_id': jnp.array(tids, dtype=jnp.int32),
        }
        return pred_values, batch

    key = jax.random.PRNGKey(0)
    ks = jax.random.split(key, 5)

    cases = [
        # (key, B, T, C, valid lengths, target ids, max_tt)
        (ks[0], 2, 256, 10, [200, 150], [3, 1], None),                     # single tile, masked
        (ks[1], 3, 5000, 37, [5000, 3777, 129], [5, 0, 36], None),          # single big tile, mixed
        (ks[2], 5, 3000, 16, [3000] * 5, [0, 1, 2, 3, 4], 1024),            # multi-tile: fast path + last masked
        (ks[3], 5, 3000, 16, [3000, 2000, 1500, 800, 2999], [5, 6, 7, 8, 9], 1024),  # multi-tile, all masked
        (ks[4], 20, 1000, 12, list(range(50, 1001, 50)), [i % 12 for i in range(20)], None),  # multiple B blocks
    ]
    for (kk, B, T, C, lens, tids, max_tt) in cases:
        pv, bt = make_inputs(kk, B, T, C, lens, tids)
        out = spex_plus_loss(pv, bt, max_tt=max_tt)
        out = jax.tree_util.tree_map(jax.block_until_ready, out)
        ref = _ref_loss(pv, bt)
        for name in ('loss', 'ce_loss', 'si_sdr', 'correct_speakers'):
            assert jnp.allclose(out[name], ref[name], rtol=2e-3, atol=2e-3), \
                (name, out[name], ref[name])

    print("KERNEL_OK")
</pallas_src>

<mosaic_0001>
module attributes {stable_mosaic.version = 11 : i64} {
  func.func @_spex_loss_kernel(%arg0: i32, %arg1: i32, %arg2: memref<1xi32, #tpu.memory_space<smem>>, %arg3: memref<8x256xf32, #tpu.memory_space<vmem>>, %arg4: memref<8x256xf32, #tpu.memory_space<vmem>>, %arg5: memref<8x256xf32, #tpu.memory_space<vmem>>, %arg6: memref<8x256xf32, #tpu.memory_space<vmem>>, %arg7: memref<8x10xf32, #tpu.memory_space<vmem>>, %arg8: memref<8x1xi32, #tpu.memory_space<vmem>>, %arg9: memref<8x1xi32, #tpu.memory_space<vmem>>, %arg10: memref<8x8xf32, #tpu.memory_space<vmem>>, %arg11: memref<8x16xf32, #tpu.memory_space<vmem>>) attributes {dimension_semantics = [#tpu.dimension_semantics<parallel>, #tpu.dimension_semantics<arbitrary>], iteration_bounds = array<i64: 1, 1>, scalar_prefetch = 1 : i64, scratch_operands = 1 : i64, tpu.core_type = #tpu.core_type<tc>, window_params = [{transform_indices = @transform_0, window_bounds = array<i64: 8, 256>}, {transform_indices = @transform_1, window_bounds = array<i64: 8, 256>}, {transform_indices = @transform_2, window_bounds = array<i64: 8, 256>}, {transform_indices = @transform_3, window_bounds = array<i64: 8, 256>}, {transform_indices = @transform_4, window_bounds = array<i64: 8, 10>}, {transform_indices = @transform_5, window_bounds = array<i64: 8, 1>}, {transform_indices = @transform_6, window_bounds = array<i64: 8, 1>}, {transform_indices = @transform_7, window_bounds = array<i64: 8, 8>}]} {
    %c0_i32 = arith.constant 0 : i32
    %0 = arith.cmpi eq, %arg1, %c0_i32 : i32
    %1 = arith.extui %0 : i1 to i32
    %c0_i32_0 = arith.constant 0 : i32
    %2 = arith.cmpi ne, %1, %c0_i32_0 : i32
    scf.if %2 {
      %cst = arith.constant 0.000000e+00 : f32
      %16 = vector.broadcast %cst : f32 to vector<8x16xf32>
      %c0 = arith.constant 0 : index
      %c0_5 = arith.constant 0 : index
      %17 = vector.load %arg11[%c0, %c0_5] : memref<8x16xf32, #tpu.memory_space<vmem>>, vector<8x16xf32>
      tpu.vector_store %arg11[%c0, %c0_5], %16 {strides = array<i32>} : memref<8x16xf32, #tpu.memory_space<vmem>>, vector<8x16xf32>,
    } else {
    }
    %c1_i32 = arith.constant 1 : i32
    %3 = arith.addi %arg1, %c1_i32 : i32
    %c256_i32 = arith.constant 256 : i32
    %4 = arith.muli %3, %c256_i32 : i32
    %5 = arith.index_cast %arg0 : i32 to index
    %6 = memref.load %arg2[%5] : memref<1xi32, #tpu.memory_space<smem>>
    %7 = arith.cmpi sle, %4, %6 : i32
    %8 = arith.extui %7 : i1 to i32
    %c0_i32_1 = arith.constant 0 : i32
    %9 = arith.cmpi ne, %8, %c0_i32_1 : i32
    scf.if %9 {
      %c0 = arith.constant 0 : index
      %c0_5 = arith.constant 0 : index
      %16 = vector.load %arg6[%c0, %c0_5] : memref<8x256xf32, #tpu.memory_space<vmem>>, vector<8x256xf32>
      %c0_6 = arith.constant 0 : index
      %c0_7 = arith.constant 0 : index
      %17 = vector.load %arg3[%c0_6, %c0_7] : memref<8x256xf32, #tpu.memory_space<vmem>>, vector<8x256xf32>
      %c0_8 = arith.constant 0 : index
      %c0_9 = arith.constant 0 : index
      %18 = vector.load %arg4[%c0_8, %c0_9] : memref<8x256xf32, #tpu.memory_space<vmem>>, vector<8x256xf32>
      %c0_10 = arith.constant 0 : index
      %c0_11 = arith.constant 0 : index
      %19 = vector.load %arg5[%c0_10, %c0_11] : memref<8x256xf32, #tpu.memory_space<vmem>>, vector<8x256xf32>
      %c0_12 = arith.constant 0 : index
      %c0_13 = arith.constant 0 : index
      %20 = vector.load %arg11[%c0_12, %c0_13] : memref<8x16xf32, #tpu.memory_space<vmem>>, vector<8x1xf32>
      %cst = arith.constant dense<0.000000e+00> : vector<8xf32>
      %21 = vector.multi_reduction <add>, %16, %cst [1] : vector<8x256xf32> to vector<8xf32>
      %22 = vector.shape_cast %21 : vector<8xf32> to vector<8x1xf32>
      %23 = arith.addf %20, %22 : vector<8x1xf32>
      %c0_14 = arith.constant 0 : index
      %c0_15 = arith.constant 0 : index
      %24 = vector.load %arg11[%c0_14, %c0_15] : memref<8x16xf32, #tpu.memory_space<vmem>>, vector<8x1xf32>
      tpu.vector_store %arg11[%c0_14, %c0_15], %23 {strides = array<i32>} : memref<8x16xf32, #tpu.memory_space<vmem>>, vector<8x1xf32>,
      %c0_16 = arith.constant 0 : index
      %c1 = arith.constant 1 : index
      %25 = vector.load %arg11[%c0_16, %c1] : memref<8x16xf32, #tpu.memory_space<vmem>>, vector<8x1xf32>
      %26 = arith.mulf %16, %16 : vector<8x256xf32>
      %cst_17 = arith.constant dense<0.000000e+00> : vector<8xf32>
      %27 = vector.multi_reduction <add>, %26, %cst_17 [1] : vector<8x256xf32> to vector<8xf32>
      %28 = vector.shape_cast %27 : vector<8xf32> to vector<8x1xf32>
      %29 = arith.addf %25, %28 : vector<8x1xf32>
      %c0_18 = arith.constant 0 : index
      %c1_19 = arith.constant 1 : index
      %30 = vector.load %arg11[%c0_18, %c1_19] : memref<8x16xf32, #tpu.memory_space<vmem>>, vector<8x1xf32>
      tpu.vector_store %arg11[%c0_18, %c1_19], %29 {strides = array<i32>} : memref<8x16xf32, #tpu.memory_space<vmem>>, vector<8x1xf32>,
      %c0_20 = arith.constant 0 : index
      %c2 = arith.constant 2 : index
      %31 = vector.load %arg11[%c0_20, %c2] : memref<8x16xf32, #tpu.memory_space<vmem>>, vector<8x1xf32>
      %cst_21 = arith.constant dense<0.000000e+00> : vector<8xf32>
      %32 = vector.multi_reduction <add>, %17, %cst_21 [1] : vector<8x256xf32> to vector<8xf32>
      %33 = vector.shape_cast %32 : vector<8xf32> to vector<8x1xf32>
      %34 = arith.addf %31, %33 : vector<8x1xf32>
      %c0_22 = arith.constant 0 : index
      %c2_23 = arith.constant 2 : index
      %35 = vector.load %arg11[%c0_22, %c2_23] : memref<8x16xf32, #tpu.memory_space<vmem>>, vector<8x1xf32>
      tpu.vector_store %arg11[%c0_22, %c2_23], %34 {strides = array<i32>} : memref<8x16xf32, #tpu.memory_space<vmem>>, vector<8x1xf32>,
      %c0_24 = arith.constant 0 : index
      %c3 = arith.constant 3 : index
      %36 = vector.load %arg11[%c0_24, %c3] : memref<8x16xf32, #tpu.memory_space<vmem>>, vector<8x1xf32>
      %37 = arith.mulf %17, %17 : vector<8x256xf32>
      %cst_25 = arith.constant dense<0.000000e+00> : vector<8xf32>
      %38 = vector.multi_reduction <add>, %37, %cst_25 [1] : vector<8x256xf32> to vector<8xf32>
      %39 = vector.shape_cast %38 : vector<8xf32> to vector<8x1xf32>
      %40 = arith.addf %36, %39 : vector<8x1xf32>
      %c0_26 = arith.constant 0 : index
      %c3_27 = arith.constant 3 : index
      %41 = vector.load %arg11[%c0_26, %c3_27] : memref<8x16xf32, #tpu.memory_space<vmem>>, vector<8x1xf32>
      tpu.vector_store %arg11[%c0_26, %c3_27], %40 {strides = array<i32>} : memref<8x16xf32, #tpu.memory_space<vmem>>, vector<8x1xf32>,
      %c0_28 = arith.constant 0 : index
      %c4 = arith.constant 4 : index
      %42 = vector.load %arg11[%c0_28, %c4] : memref<8x16xf32, #tpu.memory_space<vmem>>, vector<8x1xf32>
      %43 = arith.mulf %17, %16 : vector<8x256xf32>
      %cst_29 = arith.constant dense<0.000000e+00> : vector<8xf32>
      %44 = vector.multi_reduction <add>, %43, %cst_29 [1] : vector<8x256xf32> to vector<8xf32>
      %45 = vector.shape_cast %44 : vector<8xf32> to vector<8x1xf32>
      %46 = arith.addf %42, %45 : vector<8x1xf32>
      %c0_30 = arith.constant 0 : index
      %c4_31 = arith.constant 4 : index
      %47 = vector.load %arg11[%c0_30, %c4_31] : memref<8x16xf32, #tpu.memory_space<vmem>>, vector<8x1xf32>
      tpu.vector_store %arg11[%c0_30, %c4_31], %46 {strides = array<i32>} : memref<8x16xf32, #tpu.memory_space<vmem>>, vector<8x1xf32>,
      %c0_32 = arith.constant 0 : index
      %c5 = arith.constant 5 : index
      %48 = vector.load %arg11[%c0_32, %c5] : memref<8x16xf32, #tpu.memory_space<vmem>>, vector<8x1xf32>
      %cst_33 = arith.constant dense<0.000000e+00> : vector<8xf32>
      %49 = vector.multi_reduction <add>, %18, %cst_33 [1] : vector<8x256xf32> to vector<8xf32>
      %50 = vector.shape_cast %49 : vector<8xf32> to vector<8x1xf32>
      %51 = arith.addf %48, %50 : vector<8x1xf32>
      %c0_34 = arith.constant 0 : index
      %c5_35 = arith.constant 5 : index
      %52 = vector.load %arg11[%c0_34, %c5_35] : memref<8x16xf32, #tpu.memory_space<vmem>>, vector<8x1xf32>
      tpu.vector_store %arg11[%c0_34, %c5_35], %51 {strides = array<i32>} : memref<8x16xf32, #tpu.memory_space<vmem>>, vector<8x1xf32>,
      %c0_36 = arith.constant 0 : index
      %c6 = arith.constant 6 : index
      %53 = vector.load %arg11[%c0_36, %c6] : memref<8x16xf32, #tpu.memory_space<vmem>>, vector<8x1xf32>
      %54 = arith.mulf %18, %18 : vector<8x256xf32>
      %cst_37 = arith.constant dense<0.000000e+00> : vector<8xf32>
      %55 = vector.multi_reduction <add>, %54, %cst_37 [1] : vector<8x256xf32> to vector<8xf32>
      %56 = vector.shape_cast %55 : vector<8xf32> to vector<8x1xf32>
      %57 = arith.addf %53, %56 : vector<8x1xf32>
      %c0_38 = arith.constant 0 : index
      %c6_39 = arith.constant 6 : index
      %58 = vector.load %arg11[%c0_38, %c6_39] : memref<8x16xf32, #tpu.memory_space<vmem>>, vector<8x1xf32>
      tpu.vector_store %arg11[%c0_38, %c6_39], %57 {strides = array<i32>} : memref<8x16xf32, #tpu.memory_space<vmem>>, vector<8x1xf32>,
      %c0_40 = arith.constant 0 : index
      %c7 = arith.constant 7 : index
      %59 = vector.load %arg11[%c0_40, %c7] : memref<8x16xf32, #tpu.memory_space<vmem>>, vector<8x1xf32>
      %60 = arith.mulf %18, %16 : vector<8x256xf32>
      %cst_41 = arith.constant dense<0.000000e+00> : vector<8xf32>
      %61 = vector.multi_reduction <add>, %60, %cst_41 [1] : vector<8x256xf32> to vector<8xf32>
      %62 = vector.shape_cast %61 : vector<8xf32> to vector<8x1xf32>
      %63 = arith.addf %59, %62 : vector<8x1xf32>
      %c0_42 = arith.constant 0 : index
      %c7_43 = arith.constant 7 : index
      %64 = vector.load %arg11[%c0_42, %c7_43] : memref<8x16xf32, #tpu.memory_space<vmem>>, vector<8x1xf32>
      tpu.vector_store %arg11[%c0_42, %c7_43], %63 {strides = array<i32>} : memref<8x16xf32, #tpu.memory_space<vmem>>, vector<8x1xf32>,
      %c0_44 = arith.constant 0 : index
      %c8 = arith.constant 8 : index
      %65 = vector.load %arg11[%c0_44, %c8] : memref<8x16xf32, #tpu.memory_space<vmem>>, vector<8x1xf32>
      %cst_45 = arith.constant dense<0.000000e+00> : vector<8xf32>
      %66 = vector.multi_reduction <add>, %19, %cst_45 [1] : vector<8x256xf32> to vector<8xf32>
      %67 = vector.shape_cast %66 : vector<8xf32> to vector<8x1xf32>
      %68 = arith.addf %65, %67 : vector<8x1xf32>
      %c0_46 = arith.constant 0 : index
      %c8_47 = arith.constant 8 : index
      %69 = vector.load %arg11[%c0_46, %c8_47] : memref<8x16xf32, #tpu.memory_space<vmem>>, vector<8x1xf32>
      tpu.vector_store %arg11[%c0_46, %c8_47], %68 {strides = array<i32>} : memref<8x16xf32, #tpu.memory_space<vmem>>, vector<8x1xf32>,
      %c0_48 = arith.constant 0 : index
      %c9 = arith.constant 9 : index
      %70 = vector.load %arg11[%c0_48, %c9] : memref<8x16xf32, #tpu.memory_space<vmem>>, vector<8x1xf32>
      %71 = arith.mulf %19, %19 : vector<8x256xf32>
      %cst_49 = arith.constant dense<0.000000e+00> : vector<8xf32>
      %72 = vector.multi_reduction <add>, %71, %cst_49 [1] : vector<8x256xf32> to vector<8xf32>
      %73 = vector.shape_cast %72 : vector<8xf32> to vector<8x1xf32>
      %74 = arith.addf %70, %73 : vector<8x1xf32>
      %c0_50 = arith.constant 0 : index
      %c9_51 = arith.constant 9 : index
      %75 = vector.load %arg11[%c0_50, %c9_51] : memref<8x16xf32, #tpu.memory_space<vmem>>, vector<8x1xf32>
      tpu.vector_store %arg11[%c0_50, %c9_51], %74 {strides = array<i32>} : memref<8x16xf32, #tpu.memory_space<vmem>>, vector<8x1xf32>,
      %c0_52 = arith.constant 0 : index
      %c10 = arith.constant 10 : index
      %76 = vector.load %arg11[%c0_52, %c10] : memref<8x16xf32, #tpu.memory_space<vmem>>, vector<8x1xf32>
      %77 = arith.mulf %19, %16 : vector<8x256xf32>
      %cst_53 = arith.constant dense<0.000000e+00> : vector<8xf32>
      %78 = vector.multi_reduction <add>, %77, %cst_53 [1] : vector<8x256xf32> to vector<8xf32>
      %79 = vector.shape_cast %78 : vector<8xf32> to vector<8x1xf32>
      %80 = arith.addf %76, %79 : vector<8x1xf32>
      %c0_54 = arith.constant 0 : index
      %c10_55 = arith.constant 10 : index
      %81 = vector.load %arg11[%c0_54, %c10_55] : memref<8x16xf32, #tpu.memory_space<vmem>>, vector<8x1xf32>
      tpu.vector_store %arg11[%c0_54, %c10_55], %80 {strides = array<i32>} : memref<8x16xf32, #tpu.memory_space<vmem>>, vector<8x1xf32>,
    } else {
    }
    %true = arith.constant true
    %10 = arith.xori %7, %true : i1
    %11 = arith.extui %10 : i1 to i32
    %c0_i32_2 = arith.constant 0 : i32
    %12 = arith.cmpi ne, %11, %c0_i32_2 : i32
    scf.if %12 {
      %c0 = arith.constant 0 : index
      %c0_5 = arith.constant 0 : index
      %16 = vector.load %arg8[%c0, %c0_5] : memref<8x1xi32, #tpu.memory_space<vmem>>, vector<8x1xi32>
      %c256_i32_6 = arith.constant 256 : i32
      %17 = arith.muli %arg1, %c256_i32_6 : i32
      %18 = vector.broadcast %17 : i32 to vector<8x1xi32>
      %19 = arith.subi %16, %18 : vector<8x1xi32>
      %20 = tpu.iota {dimensions = array<i32: 1>} : vector<8x256xi32>
      %21 = vector.broadcast %19 : vector<8x1xi32> to vector<8x256xi32>
      %22 = arith.cmpi slt, %20, %21 : vector<8x256xi32>
      %c0_7 = arith.constant 0 : index
      %c0_8 = arith.constant 0 : index
      %23 = vector.load %arg6[%c0_7, %c0_8] : memref<8x256xf32, #tpu.memory_space<vmem>>, vector<8x256xf32>
      %cst = arith.constant 0.000000e+00 : f32
      %24 = vector.broadcast %cst : f32 to vector<8x256xf32>
      %25 = arith.select %22, %23, %24 : vector<8x256xi1>, vector<8x256xf32>
      %c0_9 = arith.constant 0 : index
      %c0_10 = arith.constant 0 : index
      %26 = vector.load %arg3[%c0_9, %c0_10] : memref<8x256xf32, #tpu.memory_space<vmem>>, vector<8x256xf32>
      %cst_11 = arith.constant 0.000000e+00 : f32
      %27 = vector.broadcast %cst_11 : f32 to vector<8x256xf32>
      %28 = arith.select %22, %26, %27 : vector<8x256xi1>, vector<8x256xf32>
      %c0_12 = arith.constant 0 : index
      %c0_13 = arith.constant 0 : index
      %29 = vector.load %arg4[%c0_12, %c0_13] : memref<8x256xf32, #tpu.memory_space<vmem>>, vector<8x256xf32>
      %cst_14 = arith.constant 0.000000e+00 : f32
      %30 = vector.broadcast %cst_14 : f32 to vector<8x256xf32>
      %31 = arith.select %22, %29, %30 : vector<8x256xi1>, vector<8x256xf32>
      %c0_15 = arith.constant 0 : index
      %c0_16 = arith.constant 0 : index
      %32 = vector.load %arg5[%c0_15, %c0_16] : memref<8x256xf32, #tpu.memory_space<vmem>>, vector<8x256xf32>
      %cst_17 = arith.constant 0.000000e+00 : f32
      %33 = vector.broadcast %cst_17 : f32 to vector<8x256xf32>
      %34 = arith.select %22, %32, %33 : vector<8x256xi1>, vector<8x256xf32>
      %c0_18 = arith.constant 0 : index
      %c0_19 = arith.constant 0 : index
      %35 = vector.load %arg11[%c0_18, %c0_19] : memref<8x16xf32, #tpu.memory_space<vmem>>, vector<8x1xf32>
      %cst_20 = arith.constant dense<0.000000e+00> : vector<8xf32>
      %36 = vector.multi_reduction <add>, %25, %cst_20 [1] : vector<8x256xf32> to vector<8xf32>
      %37 = vector.shape_cast %36 : vector<8xf32> to vector<8x1xf32>
      %38 = arith.addf %35, %37 : vector<8x1xf32>
      %c0_21 = arith.constant 0 : index
      %c0_22 = arith.constant 0 : index
      %39 = vector.load %arg11[%c0_21, %c0_22] : memref<8x16xf32, #tpu.memory_space<vmem>>, vector<8x1xf32>
      tpu.vector_store %arg11[%c0_21, %c0_22], %38 {strides = array<i32>} : memref<8x16xf32, #tpu.memory_space<vmem>>, vector<8x1xf32>,
      %c0_23 = arith.constant 0 : index
      %c1 = arith.constant 1 : index
      %40 = vector.load %arg11[%c0_23, %c1] : memref<8x16xf32, #tpu.memory_space<vmem>>, vector<8x1xf32>
      %41 = arith.mulf %25, %25 : vector<8x256xf32>
      %cst_24 = arith.constant dense<0.000000e+00> : vector<8xf32>
      %42 = vector.multi_reduction <add>, %41, %cst_24 [1] : vector<8x256xf32> to vector<8xf32>
      %43 = vector.shape_cast %42 : vector<8xf32> to vector<8x1xf32>
      %44 = arith.addf %40, %43 : vector<8x1xf32>
      %c0_25 = arith.constant 0 : index
      %c1_26 = arith.constant 1 : index
      %45 = vector.load %arg11[%c0_25, %c1_26] : memref<8x16xf32, #tpu.memory_space<vmem>>, vector<8x1xf32>
      tpu.vector_store %arg11[%c0_25, %c1_26], %44 {strides = array<i32>} : memref<8x16xf32, #tpu.memory_space<vmem>>, vector<8x1xf32>,
      %c0_27 = arith.constant 0 : index
      %c2 = arith.constant 2 : index
      %46 = vector.load %arg11[%c0_27, %c2] : memref<8x16xf32, #tpu.memory_space<vmem>>, vector<8x1xf32>
      %cst_28 = arith.constant dense<0.000000e+00> : vector<8xf32>
      %47 = vector.multi_reduction <add>, %28, %cst_28 [1] : vector<8x256xf32> to vector<8xf32>
      %48 = vector.shape_cast %47 : vector<8xf32> to vector<8x1xf32>
      %49 = arith.addf %46, %48 : vector<8x1xf32>
      %c0_29 = arith.constant 0 : index
      %c2_30 = arith.constant 2 : index
      %50 = vector.load %arg11[%c0_29, %c2_30] : memref<8x16xf32, #tpu.memory_space<vmem>>, vector<8x1xf32>
      tpu.vector_store %arg11[%c0_29, %c2_30], %49 {strides = array<i32>} : memref<8x16xf32, #tpu.memory_space<vmem>>, vector<8x1xf32>,
      %c0_31 = arith.constant 0 : index
      %c3 = arith.constant 3 : index
      %51 = vector.load %arg11[%c0_31, %c3] : memref<8x16xf32, #tpu.memory_space<vmem>>, vector<8x1xf32>
      %52 = arith.mulf %28, %28 : vector<8x256xf32>
      %cst_32 = arith.constant dense<0.000000e+00> : vector<8xf32>
      %53 = vector.multi_reduction <add>, %52, %cst_32 [1] : vector<8x256xf32> to vector<8xf32>
      %54 = vector.shape_cast %53 : vector<8xf32> to vector<8x1xf32>
      %55 = arith.addf %51, %54 : vector<8x1xf32>
      %c0_33 = arith.constant 0 : index
      %c3_34 = arith.constant 3 : index
      %56 = vector.load %arg11[%c0_33, %c3_34] : memref<8x16xf32, #tpu.memory_space<vmem>>, vector<8x1xf32>
      tpu.vector_store %arg11[%c0_33, %c3_34], %55 {strides = array<i32>} : memref<8x16xf32, #tpu.memory_space<vmem>>, vector<8x1xf32>,
      %c0_35 = arith.constant 0 : index
      %c4 = arith.constant 4 : index
      %57 = vector.load %arg11[%c0_35, %c4] : memref<8x16xf32, #tpu.memory_space<vmem>>, vector<8x1xf32>
      %58 = arith.mulf %28, %25 : vector<8x256xf32>
      %cst_36 = arith.constant dense<0.000000e+00> : vector<8xf32>
      %59 = vector.multi_reduction <add>, %58, %cst_36 [1] : vector<8x256xf32> to vector<8xf32>
      %60 = vector.shape_cast %59 : vector<8xf32> to vector<8x1xf32>
      %61 = arith.addf %57, %60 : vector<8x1xf32>
      %c0_37 = arith.constant 0 : index
      %c4_38 = arith.constant 4 : index
      %62 = vector.load %arg11[%c0_37, %c4_38] : memref<8x16xf32, #tpu.memory_space<vmem>>, vector<8x1xf32>
      tpu.vector_store %arg11[%c0_37, %c4_38], %61 {strides = array<i32>} : memref<8x16xf32, #tpu.memory_space<vmem>>, vector<8x1xf32>,
      %c0_39 = arith.constant 0 : index
      %c5 = arith.constant 5 : index
      %63 = vector.load %arg11[%c0_39, %c5] : memref<8x16xf32, #tpu.memory_space<vmem>>, vector<8x1xf32>
      %cst_40 = arith.constant dense<0.000000e+00> : vector<8xf32>
      %64 = vector.multi_reduction <add>, %31, %cst_40 [1] : vector<8x256xf32> to vector<8xf32>
      %65 = vector.shape_cast %64 : vector<8xf32> to vector<8x1xf32>
      %66 = arith.addf %63, %65 : vector<8x1xf32>
      %c0_41 = arith.constant 0 : index
      %c5_42 = arith.constant 5 : index
      %67 = vector.load %arg11[%c0_41, %c5_42] : memref<8x16xf32, #tpu.memory_space<vmem>>, vector<8x1xf32>
      tpu.vector_store %arg11[%c0_41, %c5_42], %66 {strides = array<i32>} : memref<8x16xf32, #tpu.memory_space<vmem>>, vector<8x1xf32>,
      %c0_43 = arith.constant 0 : index
      %c6 = arith.constant 6 : index
      %68 = vector.load %arg11[%c0_43, %c6] : memref<8x16xf32, #tpu.memory_space<vmem>>, vector<8x1xf32>
      %69 = arith.mulf %31, %31 : vector<8x256xf32>
      %cst_44 = arith.constant dense<0.000000e+00> : vector<8xf32>
      %70 = vector.multi_reduction <add>, %69, %cst_44 [1] : vector<8x256xf32> to vector<8xf32>
      %71 = vector.shape_cast %70 : vector<8xf32> to vector<8x1xf32>
      %72 = arith.addf %68, %71 : vector<8x1xf32>
      %c0_45 = arith.constant 0 : index
      %c6_46 = arith.constant 6 : index
      %73 = vector.load %arg11[%c0_45, %c6_46] : memref<8x16xf32, #tpu.memory_space<vmem>>, vector<8x1xf32>
      tpu.vector_store %arg11[%c0_45, %c6_46], %72 {strides = array<i32>} : memref<8x16xf32, #tpu.memory_space<vmem>>, vector<8x1xf32>,
      %c0_47 = arith.constant 0 : index
      %c7 = arith.constant 7 : index
      %74 = vector.load %arg11[%c0_47, %c7] : memref<8x16xf32, #tpu.memory_space<vmem>>, vector<8x1xf32>
      %75 = arith.mulf %31, %25 : vector<8x256xf32>
      %cst_48 = arith.constant dense<0.000000e+00> : vector<8xf32>
      %76 = vector.multi_reduction <add>, %75, %cst_48 [1] : vector<8x256xf32> to vector<8xf32>
      %77 = vector.shape_cast %76 : vector<8xf32> to vector<8x1xf32>
      %78 = arith.addf %74, %77 : vector<8x1xf32>
      %c0_49 = arith.constant 0 : index
      %c7_50 = arith.constant 7 : index
      %79 = vector.load %arg11[%c0_49, %c7_50] : memref<8x16xf32, #tpu.memory_space<vmem>>, vector<8x1xf32>
      tpu.vector_store %arg11[%c0_49, %c7_50], %78 {strides = array<i32>} : memref<8x16xf32, #tpu.memory_space<vmem>>, vector<8x1xf32>,
      %c0_51 = arith.constant 0 : index
      %c8 = arith.constant 8 : index
      %80 = vector.load %arg11[%c0_51, %c8] : memref<8x16xf32, #tpu.memory_space<vmem>>, vector<8x1xf32>
      %cst_52 = arith.constant dense<0.000000e+00> : vector<8xf32>
      %81 = vector.multi_reduction <add>, %34, %cst_52 [1] : vector<8x256xf32> to vector<8xf32>
      %82 = vector.shape_cast %81 : vector<8xf32> to vector<8x1xf32>
      %83 = arith.addf %80, %82 : vector<8x1xf32>
      %c0_53 = arith.constant 0 : index
      %c8_54 = arith.constant 8 : index
      %84 = vector.load %arg11[%c0_53, %c8_54] : memref<8x16xf32, #tpu.memory_space<vmem>>, vector<8x1xf32>
      tpu.vector_store %arg11[%c0_53, %c8_54], %83 {strides = array<i32>} : memref<8x16xf32, #tpu.memory_space<vmem>>, vector<8x1xf32>,
      %c0_55 = arith.constant 0 : index
      %c9 = arith.constant 9 : index
      %85 = vector.load %arg11[%c0_55, %c9] : memref<8x16xf32, #tpu.memory_space<vmem>>, vector<8x1xf32>
      %86 = arith.mulf %34, %34 : vector<8x256xf32>
      %cst_56 = arith.constant dense<0.000000e+00> : vector<8xf32>
      %87 = vector.multi_reduction <add>, %86, %cst_56 [1] : vector<8x256xf32> to vector<8xf32>
      %88 = vector.shape_cast %87 : vector<8xf32> to vector<8x1xf32>
      %89 = arith.addf %85, %88 : vector<8x1xf32>
      %c0_57 = arith.constant 0 : index
      %c9_58 = arith.constant 9 : index
      %90 = vector.load %arg11[%c0_57, %c9_58] : memref<8x16xf32, #tpu.memory_space<vmem>>, vector<8x1xf32>
      tpu.vector_store %arg11[%c0_57, %c9_58], %89 {strides = array<i32>} : memref<8x16xf32, #tpu.memory_space<vmem>>, vector<8x1xf32>,
      %c0_59 = arith.constant 0 : index
      %c10 = arith.constant 10 : index
      %91 = vector.load %arg11[%c0_59, %c10] : memref<8x16xf32, #tpu.memory_space<vmem>>, vector<8x1xf32>
      %92 = arith.mulf %34, %25 : vector<8x256xf32>
      %cst_60 = arith.constant dense<0.000000e+00> : vector<8xf32>
      %93 = vector.multi_reduction <add>, %92, %cst_60 [1] : vector<8x256xf32> to vector<8xf32>
      %94 = vector.shape_cast %93 : vector<8xf32> to vector<8x1xf32>
      %95 = arith.addf %91, %94 : vector<8x1xf32>
      %c0_61 = arith.constant 0 : index
      %c10_62 = arith.constant 10 : index
      %96 = vector.load %arg11[%c0_61, %c10_62] : memref<8x16xf32, #tpu.memory_space<vmem>>, vector<8x1xf32>
      tpu.vector_store %arg11[%c0_61, %c10_62], %95 {strides = array<i32>} : memref<8x16xf32, #tpu.memory_space<vmem>>, vector<8x1xf32>,
    } else {
    }
    %c0_i32_3 = arith.constant 0 : i32
    %13 = arith.cmpi eq, %arg1, %c0_i32_3 : i32
    %14 = arith.extui %13 : i1 to i32
    %c0_i32_4 = arith.constant 0 : i32
    %15 = arith.cmpi ne, %14, %c0_i32_4 : i32
    scf.if %15 {
      %c0 = arith.constant 0 : index
      %c0_5 = arith.constant 0 : index
      %16 = vector.load %arg11[%c0, %c0_5] : memref<8x16xf32, #tpu.memory_space<vmem>>, vector<8x16xf32>
      %17 = vector.extract_strided_slice %16 {offsets = [0, 0], sizes = [8, 1], strides = [1, 1]} : vector<8x16xf32> to vector<8x1xf32>
      %18 = vector.extract_strided_slice %16 {offsets = [0, 1], sizes = [8, 1], strides = [1, 1]} : vector<8x16xf32> to vector<8x1xf32>
      %19 = arith.mulf %17, %17 : vector<8x1xf32>
      %cst = arith.constant 3.906250e-03 : f32
      %20 = vector.broadcast %cst : f32 to vector<8x1xf32>
      %21 = arith.mulf %19, %20 : vector<8x1xf32>
      %22 = arith.subf %18, %21 : vector<8x1xf32>
      %cst_6 = arith.constant 9.99999993E-9 : f32
      %23 = vector.broadcast %cst_6 : f32 to vector<8x1xf32>
      %24 = arith.addf %22, %23 : vector<8x1xf32>
      %cst_7 = arith.constant 1.000000e+00 : f32
      %25 = vector.broadcast %cst_7 : f32 to vector<8x1xf32>
      %26 = arith.divf %25, %24 : vector<8x1xf32>
      %27 = vector.extract_strided_slice %16 {offsets = [0, 2], sizes = [8, 1], strides = [1, 1]} : vector<8x16xf32> to vector<8x1xf32>
      %28 = vector.extract_strided_slice %16 {offsets = [0, 3], sizes = [8, 1], strides = [1, 1]} : vector<8x16xf32> to vector<8x1xf32>
      %29 = vector.extract_strided_slice %16 {offsets = [0, 4], sizes = [8, 1], strides = [1, 1]} : vector<8x16xf32> to vector<8x1xf32>
      %30 = arith.mulf %27, %27 : vector<8x1xf32>
      %cst_8 = arith.constant 3.906250e-03 : f32
      %31 = vector.broadcast %cst_8 : f32 to vector<8x1xf32>
      %32 = arith.mulf %30, %31 : vector<8x1xf32>
      %33 = arith.subf %28, %32 : vector<8x1xf32>
      %34 = arith.mulf %27, %17 : vector<8x1xf32>
      %cst_9 = arith.constant 3.906250e-03 : f32
      %35 = vector.broadcast %cst_9 : f32 to vector<8x1xf32>
      %36 = arith.mulf %34, %35 : vector<8x1xf32>
      %37 = arith.subf %29, %36 : vector<8x1xf32>
      %38 = arith.mulf %37, %37 : vector<8x1xf32>
      %39 = arith.mulf %38, %22 : vector<8x1xf32>
      %40 = arith.mulf %39, %26 : vector<8x1xf32>
      %41 = arith.mulf %40, %26 : vector<8x1xf32>
      %cst_10 = arith.constant 2.000000e+00 : f32
      %42 = vector.broadcast %cst_10 : f32 to vector<8x1xf32>
      %43 = arith.mulf %42, %38 : vector<8x1xf32>
      %44 = arith.mulf %43, %26 : vector<8x1xf32>
      %45 = arith.subf %33, %44 : vector<8x1xf32>
      %46 = arith.addf %45, %41 : vector<8x1xf32>
      %cst_11 = arith.constant 0.000000e+00 : f32
      %47 = vector.broadcast %cst_11 : f32 to vector<8x1xf32>
      %48 = arith.maximumf %41, %47 : vector<8x1xf32>
      %49 = math.sqrt %48 : vector<8x1xf32>
      %cst_12 = arith.constant 0.000000e+00 : f32
      %50 = vector.broadcast %cst_12 : f32 to vector<8x1xf32>
      %51 = arith.maximumf %46, %50 : vector<8x1xf32>
      %52 = math.sqrt %51 : vector<8x1xf32>
      %cst_13 = arith.constant 9.99999993E-9 : f32
      %53 = vector.broadcast %cst_13 : f32 to vector<8x1xf32>
      %54 = arith.addf %52, %53 : vector<8x1xf32>
      %55 = arith.divf %49, %54 : vector<8x1xf32>
      %cst_14 = arith.constant 9.99999993E-9 : f32
      %56 = vector.broadcast %cst_14 : f32 to vector<8x1xf32>
      %57 = arith.addf %56, %55 : vector<8x1xf32>
      %58 = math.log %57 : vector<8x1xf32>
      %cst_15 = arith.constant 0.434294492 : f32
      %59 = vector.broadcast %cst_15 : f32 to vector<8x1xf32>
      %60 = arith.mulf %58, %59 : vector<8x1xf32>
      %cst_16 = arith.constant 2.000000e+01 : f32
      %61 = vector.broadcast %cst_16 : f32 to vector<8x1xf32>
      %62 = arith.mulf %61, %60 : vector<8x1xf32>
      %63 = vector.extract_strided_slice %16 {offsets = [0, 5], sizes = [8, 1], strides = [1, 1]} : vector<8x16xf32> to vector<8x1xf32>
      %64 = vector.extract_strided_slice %16 {offsets = [0, 6], sizes = [8, 1], strides = [1, 1]} : vector<8x16xf32> to vector<8x1xf32>
      %65 = vector.extract_strided_slice %16 {offsets = [0, 7], sizes = [8, 1], strides = [1, 1]} : vector<8x16xf32> to vector<8x1xf32>
      %66 = arith.mulf %63, %63 : vector<8x1xf32>
      %cst_17 = arith.constant 3.906250e-03 : f32
      %67 = vector.broadcast %cst_17 : f32 to vector<8x1xf32>
      %68 = arith.mulf %66, %67 : vector<8x1xf32>
      %69 = arith.subf %64, %68 : vector<8x1xf32>
      %70 = arith.mulf %63, %17 : vector<8x1xf32>
      %cst_18 = arith.constant 3.906250e-03 : f32
      %71 = vector.broadcast %cst_18 : f32 to vector<8x1xf32>
      %72 = arith.mulf %70, %71 : vector<8x1xf32>
      %73 = arith.subf %65, %72 : vector<8x1xf32>
      %74 = arith.mulf %73, %73 : vector<8x1xf32>
      %75 = arith.mulf %74, %22 : vector<8x1xf32>
      %76 = arith.mulf %75, %26 : vector<8x1xf32>
      %77 = arith.mulf %76, %26 : vector<8x1xf32>
      %cst_19 = arith.constant 2.000000e+00 : f32
      %78 = vector.broadcast %cst_19 : f32 to vector<8x1xf32>
      %79 = arith.mulf %78, %74 : vector<8x1xf32>
      %80 = arith.mulf %79, %26 : vector<8x1xf32>
      %81 = arith.subf %69, %80 : vector<8x1xf32>
      %82 = arith.addf %81, %77 : vector<8x1xf32>
      %cst_20 = arith.constant 0.000000e+00 : f32
      %83 = vector.broadcast %cst_20 : f32 to vector<8x1xf32>
      %84 = arith.maximumf %77, %83 : vector<8x1xf32>
      %85 = math.sqrt %84 : vector<8x1xf32>
      %cst_21 = arith.constant 0.000000e+00 : f32
      %86 = vector.broadcast %cst_21 : f32 to vector<8x1xf32>
      %87 = arith.maximumf %82, %86 : vector<8x1xf32>
      %88 = math.sqrt %87 : vector<8x1xf32>
      %cst_22 = arith.constant 9.99999993E-9 : f32
      %89 = vector.broadcast %cst_22 : f32 to vector<8x1xf32>
      %90 = arith.addf %88, %89 : vector<8x1xf32>
      %91 = arith.divf %85, %90 : vector<8x1xf32>
      %cst_23 = arith.constant 9.99999993E-9 : f32
      %92 = vector.broadcast %cst_23 : f32 to vector<8x1xf32>
      %93 = arith.addf %92, %91 : vector<8x1xf32>
      %94 = math.log %93 : vector<8x1xf32>
      %cst_24 = arith.constant 0.434294492 : f32
      %95 = vector.broadcast %cst_24 : f32 to vector<8x1xf32>
      %96 = arith.mulf %94, %95 : vector<8x1xf32>
      %cst_25 = arith.constant 2.000000e+01 : f32
      %97 = vector.broadcast %cst_25 : f32 to vector<8x1xf32>
      %98 = arith.mulf %97, %96 : vector<8x1xf32>
      %99 = vector.extract_strided_slice %16 {offsets = [0, 8], sizes = [8, 1], strides = [1, 1]} : vector<8x16xf32> to vector<8x1xf32>
      %100 = vector.extract_strided_slice %16 {offsets = [0, 9], sizes = [8, 1], strides = [1, 1]} : vector<8x16xf32> to vector<8x1xf32>
      %101 = vector.extract_strided_slice %16 {offsets = [0, 10], sizes = [8, 1], strides = [1, 1]} : vector<8x16xf32> to vector<8x1xf32>
      %102 = arith.mulf %99, %99 : vector<8x1xf32>
      %cst_26 = arith.constant 3.906250e-03 : f32
      %103 = vector.broadcast %cst_26 : f32 to vector<8x1xf32>
      %104 = arith.mulf %102, %103 : vector<8x1xf32>
      %105 = arith.subf %100, %104 : vector<8x1xf32>
      %106 = arith.mulf %99, %17 : vector<8x1xf32>
      %cst_27 = arith.constant 3.906250e-03 : f32
      %107 = vector.broadcast %cst_27 : f32 to vector<8x1xf32>
      %108 = arith.mulf %106, %107 : vector<8x1xf32>
      %109 = arith.subf %101, %108 : vector<8x1xf32>
      %110 = arith.mulf %109, %109 : vector<8x1xf32>
      %111 = arith.mulf %110, %22 : vector<8x1xf32>
      %112 = arith.mulf %111, %26 : vector<8x1xf32>
      %113 = arith.mulf %112, %26 : vector<8x1xf32>
      %cst_28 = arith.constant 2.000000e+00 : f32
      %114 = vector.broadcast %cst_28 : f32 to vector<8x1xf32>
      %115 = arith.mulf %114, %110 : vector<8x1xf32>
      %116 = arith.mulf %115, %26 : vector<8x1xf32>
      %117 = arith.subf %105, %116 : vector<8x1xf32>
      %118 = arith.addf %117, %113 : vector<8x1xf32>
      %cst_29 = arith.constant 0.000000e+00 : f32
      %119 = vector.broadcast %cst_29 : f32 to vector<8x1xf32>
      %120 = arith.maximumf %113, %119 : vector<8x1xf32>
      %121 = math.sqrt %120 : vector<8x1xf32>
      %cst_30 = arith.constant 0.000000e+00 : f32
      %122 = vector.broadcast %cst_30 : f32 to vector<8x1xf32>
      %123 = arith.maximumf %118, %122 : vector<8x1xf32>
      %124 = math.sqrt %123 : vector<8x1xf32>
      %cst_31 = arith.constant 9.99999993E-9 : f32
      %125 = vector.broadcast %cst_31 : f32 to vector<8x1xf32>
      %126 = arith.addf %124, %125 : vector<8x1xf32>
      %127 = arith.divf %121, %126 : vector<8x1xf32>
      %cst_32 = arith.constant 9.99999993E-9 : f32
      %128 = vector.broadcast %cst_32 : f32 to vector<8x1xf32>
      %129 = arith.addf %128, %127 : vector<8x1xf32>
      %130 = math.log %129 : vector<8x1xf32>
      %cst_33 = arith.constant 0.434294492 : f32
      %131 = vector.broadcast %cst_33 : f32 to vector<8x1xf32>
      %132 = arith.mulf %130, %131 : vector<8x1xf32>
      %cst_34 = arith.constant 2.000000e+01 : f32
      %133 = vector.broadcast %cst_34 : f32 to vector<8x1xf32>
      %134 = arith.mulf %133, %132 : vector<8x1xf32>
      %c0_35 = arith.constant 0 : index
      %c0_36 = arith.constant 0 : index
      %135 = vector.load %arg7[%c0_35, %c0_36] : memref<8x10xf32, #tpu.memory_space<vmem>>, vector<8x10xf32>
      %cst_37 = arith.constant dense<0xFF800000> : vector<8xf32>
      %136 = vector.multi_reduction <maximumf>, %135, %cst_37 [1] : vector<8x10xf32> to vector<8xf32>
      %137 = vector.shape_cast %136 : vector<8xf32> to vector<8x1xf32>
      %138 = vector.broadcast %137 : vector<8x1xf32> to vector<8x10xf32>
      %139 = arith.subf %135, %138 : vector<8x10xf32>
      %140 = math.exp %139 : vector<8x10xf32>
      %cst_38 = arith.constant dense<0.000000e+00> : vector<8xf32>
      %141 = vector.multi_reduction <add>, %140, %cst_38 [1] : vector<8x10xf32> to vector<8xf32>
      %142 = vector.shape_cast %141 : vector<8xf32> to vector<8x1xf32>
      %143 = math.log %142 : vector<8x1xf32>
      %c0_39 = arith.constant 0 : index
      %c0_40 = arith.constant 0 : index
      %144 = vector.load %arg9[%c0_39, %c0_40] : memref<8x1xi32, #tpu.memory_space<vmem>>, vector<8x1xi32>
      %145 = tpu.iota {dimensions = array<i32: 1>} : vector<8x10xi32>
      %146 = vector.broadcast %144 : vector<8x1xi32> to vector<8x10xi32>
      %147 = arith.cmpi eq, %145, %146 : vector<8x10xi32>
      %148 = arith.extui %147 : vector<8x10xi1> to vector<8x10xi32>
      %149 = arith.sitofp %148 : vector<8x10xi32> to vector<8x10xf32>
      %150 = arith.mulf %139, %149 : vector<8x10xf32>
      %cst_41 = arith.constant dense<0.000000e+00> : vector<8xf32>
      %151 = vector.multi_reduction <add>, %150, %cst_41 [1] : vector<8x10xf32> to vector<8xf32>
      %152 = vector.shape_cast %151 : vector<8xf32> to vector<8x1xf32>
      %153 = arith.subf %143, %152 : vector<8x1xf32>
      %154 = vector.broadcast %137 : vector<8x1xf32> to vector<8x10xf32>
      %155 = arith.cmpf oeq, %135, %154 : vector<8x10xf32>
      %c10_i32 = arith.constant 10 : i32
      %156 = vector.broadcast %c10_i32 : i32 to vector<8x10xi32>
      %157 = arith.select %155, %145, %156 : vector<8x10xi1>, vector<8x10xi32>
      %cst_42 = arith.constant dense<2147483647> : vector<8xi32>
      %158 = vector.multi_reduction <minsi>, %157, %cst_42 [1] : vector<8x10xi32> to vector<8xi32>
      %159 = vector.shape_cast %158 : vector<8xi32> to vector<8x1xi32>
      %160 = arith.cmpi eq, %159, %144 : vector<8x1xi32>
      %161 = arith.extui %160 : vector<8x1xi1> to vector<8x1xi32>
      %162 = arith.sitofp %161 : vector<8x1xi32> to vector<8x1xf32>
      %cst_43 = arith.constant 0.000000e+00 : f32
      %163 = vector.broadcast %cst_43 : f32 to vector<8x3xf32>
      %164 = tpu.concatenate %62, %98, %134, %153, %162, %163 in 1 : vector<8x1xf32>, vector<8x1xf32>, vector<8x1xf32>, vector<8x1xf32>, vector<8x1xf32>, vector<8x3xf32> -> vector<8x8xf32>
      %c0_44 = arith.constant 0 : index
      %c0_45 = arith.constant 0 : index
      %165 = vector.load %arg10[%c0_44, %c0_45] : memref<8x8xf32, #tpu.memory_space<vmem>>, vector<8x8xf32>
      tpu.vector_store %arg10[%c0_44, %c0_45], %164 {strides = array<i32>} : memref<8x8xf32, #tpu.memory_space<vmem>>, vector<8x8xf32>,
    } else {
    }
    return
  }
  func.func @transform_0(%arg0: i32, %arg1: i32, %arg2: memref<1xi32, #tpu.memory_space<smem>>) -> (i32, i32) {
    %c0_i32 = arith.constant 0 : i32
    return %arg0, %arg1 : i32, i32
  }
  func.func @transform_1(%arg0: i32, %arg1: i32, %arg2: memref<1xi32, #tpu.memory_space<smem>>) -> (i32, i32) {
    %c0_i32 = arith.constant 0 : i32
    return %arg0, %arg1 : i32, i32
  }
  func.func @transform_2(%arg0: i32, %arg1: i32, %arg2: memref<1xi32, #tpu.memory_space<smem>>) -> (i32, i32) {
    %c0_i32 = arith.constant 0 : i32
    return %arg0, %arg1 : i32, i32
  }
  func.func @transform_3(%arg0: i32, %arg1: i32, %arg2: memref<1xi32, #tpu.memory_space<smem>>) -> (i32, i32) {
    %c0_i32 = arith.constant 0 : i32
    return %arg0, %arg1 : i32, i32
  }
  func.func @transform_4(%arg0: i32, %arg1: i32, %arg2: memref<1xi32, #tpu.memory_space<smem>>) -> (i32, i32) {
    %c0_i32 = arith.constant 0 : i32
    %c0_i32_0 = arith.constant 0 : i32
    return %arg0, %c0_i32 : i32, i32
  }
  func.func @transform_5(%arg0: i32, %arg1: i32, %arg2: memref<1xi32, #tpu.memory_space<smem>>) -> (i32, i32) {
    %c0_i32 = arith.constant 0 : i32
    %c0_i32_0 = arith.constant 0 : i32
    return %arg0, %c0_i32 : i32, i32
  }
  func.func @transform_6(%arg0: i32, %arg1: i32, %arg2: memref<1xi32, #tpu.memory_space<smem>>) -> (i32, i32) {
    %c0_i32 = arith.constant 0 : i32
    %c0_i32_0 = arith.constant 0 : i32
    return %arg0, %c0_i32 : i32, i32
  }
  func.func @transform_7(%arg0: i32, %arg1: i32, %arg2: memref<1xi32, #tpu.memory_space<smem>>) -> (i32, i32) {
    %c0_i32 = arith.constant 0 : i32
    %c0_i32_0 = arith.constant 0 : i32
    return %arg0, %c0_i32 : i32, i32
  }
}

</mosaic_0001>

<llo_original>
// kernel: tpu_custom_call.1
$region0: #{tpu_custom_call.1}
  #allocation0 [shape = 'u32[]', space=smem, size = 0x4, offset = 0x4, fixed_abs, tag = 'smem constant byte address 0x4 - core index']
  #allocation1 [shape = 'u32[144,128]{1,0:T(1,128)}', space=vmem, size = 0x12000, scoped, tag = 'internal scratch']
  #allocation2 [shape = 'f32[8,16]{1,0:T(8,128)}', space=vmem, size = 0x1000, scoped, tag = 'scratch operand']
  #allocation3 [shape = 's32[1]{0}', space=sflag, size = 0x4, scoped, tag = 'scoped memory for tpu_custom_call.1']
  #allocation4 [shape = 's32[1]{0:T(128)S(6)}', space=smem, size = 0x200, scoped, tag = 'prefetched SMEM operand 0']
  %s0 = inlined_call_operand.<no memory space> [shape: s32[1], index: 0, kind: input, shape index: {}]
  %s1 = inlined_call_operand.vmem [shape: f32[2,256], index: 1, kind: input, shape index: {}]
  %s2 = inlined_call_operand.vmem [shape: f32[2,256], index: 2, kind: input, shape index: {}]
  %s3 = inlined_call_operand.vmem [shape: f32[2,256], index: 3, kind: input, shape index: {}]
  %s4 = inlined_call_operand.vmem [shape: f32[2,256], index: 4, kind: input, shape index: {}]
  %s5 = inlined_call_operand.vmem [shape: f32[2,10], index: 5, kind: input, shape index: {}]
  %s6 = inlined_call_operand.vmem [shape: s32[2,1], index: 6, kind: input, shape index: {}]
  %s7 = inlined_call_operand.vmem [shape: s32[2,1], index: 7, kind: input, shape index: {}]
  %s8 = inlined_call_operand.hbm [shape: f32[2,8], index: 8, kind: output, shape index: {}]
  %s9 = sld [smem:[#allocation0]]
  $region54: #{tpu_custom_call.1} parent=0
    _
  %s11 = ssub.s32 1, %s9
  %s12 = scalar_select 0, %s11, %s9
  %13 = sst [smem:[#allocation4]] %s0
  $region1: #{tpu_custom_call.1} parent=0
    #allocation5 [shape = 'u8[4096]{0}', space=vmem, size = 0x1000, scoped, tag = 'output window, operand 0, single buffered']
    #allocation6 [shape = 's32[1]{0}', space=sflag, size = 0x4, scoped, tag = 'scoped memory for tpu_custom_call.1']
    %14 = vsyncpa [#allocation6], 0
    // Predicated region
    $region2: #{tpu_custom_call.1} parent=1 // pred_check
      _
    $region3: #{tpu_custom_call.1} parent=1 // pred_check_branch
      %16 = sbr.rel (0) target = $region5
    $region4: #{tpu_custom_call.1} parent=1 // pred_region
      _
    $region5: #{tpu_custom_call.1} parent=1 // pred_fallthru
      _
    // Predicated region
    $region6: #{tpu_custom_call.1} parent=1 // pred_check
      _
    $region7: #{tpu_custom_call.1} parent=1 // pred_check_branch
      %18 = sbr.rel (0) target = $region9
    $region8: #{tpu_custom_call.1} parent=1 // pred_region
      _
    $region9: #{tpu_custom_call.1} parent=1 // pred_fallthru
      _
    // Predicated region
    $region10: #{tpu_custom_call.1} parent=1 // pred_check
      _
    $region11: #{tpu_custom_call.1} parent=1 // pred_check_branch
      %20 = sbr.rel (0) target = $region13
    $region12: #{tpu_custom_call.1} parent=1 // pred_region
      _
    $region13: #{tpu_custom_call.1} parent=1 // pred_fallthru
      _
    // Predicated region
    $region14: #{tpu_custom_call.1} parent=1 // pred_check
      _
    $region15: #{tpu_custom_call.1} parent=1 // pred_check_branch
      %22 = sbr.rel (0) target = $region17
    $region16: #{tpu_custom_call.1} parent=1 // pred_region
      _
    $region17: #{tpu_custom_call.1} parent=1 // pred_fallthru
      _
    // Predicated region
    $region18: #{tpu_custom_call.1} parent=1 // pred_check
      _
    $region19: #{tpu_custom_call.1} parent=1 // pred_check_branch
      %24 = sbr.rel (0) target = $region21
    $region20: #{tpu_custom_call.1} parent=1 // pred_region
      _
    $region21: #{tpu_custom_call.1} parent=1 // pred_fallthru
      _
    // Predicated region
    $region22: #{tpu_custom_call.1} parent=1 // pred_check
      _
    $region23: #{tpu_custom_call.1} parent=1 // pred_check_branch
      %26 = sbr.rel (0) target = $region25
    $region24: #{tpu_custom_call.1} parent=1 // pred_region
      _
    $region25: #{tpu_custom_call.1} parent=1 // pred_fallthru
      _
    // Predicated region
    $region26: #{tpu_custom_call.1} parent=1 // pred_check
      _
    $region27: #{tpu_custom_call.1} parent=1 // pred_check_branch
      %28 = sbr.rel (0) target = $region29
    $region28: #{tpu_custom_call.1} parent=1 // pred_region
      _
    $region29: #{tpu_custom_call.1} parent=1 // pred_fallthru
      _
    %p29 = scmp.eq.s32.totalorder 0, 0
    // Predicated region
    $region30: #{tpu_custom_call.1} parent=1 // pred_check
      %p30 = pneg %p29
    $region31: #{tpu_custom_call.1} parent=1 // pred_check_branch
      %32 = sbr.rel (%p30) target = $region33
    $region32: #{tpu_custom_call.1} parent=1 // pred_region
      %vm33 = vcmask 130048
      %34 = vst.msk [vmem:[#allocation2] sm:$0xff] %vm33, 0.0
    $region33: #{tpu_custom_call.1} parent=1 // pred_fallthru
      _
    %s35 = sadd.s32 0, 1
    %s36 = smul.u32 %s35, 256
    %s37 = sld [smem:[#allocation4]]
    %p38 = scmp.le.s32.totalorder %s36, %s37
    // Predicated region
    $region34: #{tpu_custom_call.1} parent=1 // pred_check
      %p39 = pneg %p38
    $region35: #{tpu_custom_call.1} parent=1 // pred_check_branch
      %41 = sbr.rel (%p39) target = $region37
    $region36: #{tpu_custom_call.1} parent=1 // pred_region
      %v42 = vld [vmem:[%s4] sm:$0xf]
      %v43 = vld [vmem:[%s4 + $0x4] sm:$0xf]
      %v44 = vld [vmem:[%s4 + $0x8] sm:$0xf]
      %v45 = vld [vmem:[%s4 + $0xc] sm:$0xf]
      %v46 = vld [vmem:[%s1] sm:$0xf]
      %v47 = vld [vmem:[%s1 + $0x4] sm:$0xf]
      %v48 = vld [vmem:[%s1 + $0x8] sm:$0xf]
      %v49 = vld [vmem:[%s1 + $0xc] sm:$0xf]
      %v50 = vld [vmem:[%s2] sm:$0xf]
      %v51 = vld [vmem:[%s2 + $0x4] sm:$0xf]
      %v52 = vld [vmem:[%s2 + $0x8] sm:$0xf]
      %v53 = vld [vmem:[%s2 + $0xc] sm:$0xf]
      %v54 = vld [vmem:[%s3] sm:$0xf]
      %v55 = vld [vmem:[%s3 + $0x4] sm:$0xf]
      %v56 = vld [vmem:[%s3 + $0x8] sm:$0xf]
      %v57 = vld [vmem:[%s3 + $0xc] sm:$0xf]
      %v58 = vld [vmem:[#allocation2] sm:$0xff]
      %v63 = vcombine.low %v42, %v43
      %v64 = vcombine.low %v44, %v45
      %v66 = vunpack.c.l.s4 1983009808
      %v67 = vunpack.c.0.s8 %v66
      %v68 = vlaneseq
      %v69 = vshrl.u32 %v68, 7
      %v70 = vsub.s32 %v67, %v69
      %v71 = vrot.slane %v63, %v70
      %v73 = vunpack.c.l.s4 1983009808
      %v74 = vunpack.c.0.s8 %v73
      %v75 = vlaneseq
      %v76 = vshrl.u32 %v75, 7
      %v77 = vsub.s32 %v74, %v76
      %v78 = vrot.slane %v64, %v77
      %v79 = vcombine.low %v71, %v78
      %v80 = vcombine.high %v71, %v78
      %v83 = vadd.f32 %v79, %v80
      %84 = vadd.xlane.f32.xlu0 %v83
      %v85 = vpop.xlane.xlu0 %84
      %v86 = vadd.f32 %v58, %v85
      %vm87 = vcmask 7168
      %88 = vst.msk [vmem:[#allocation2] sm:$0xff] %vm87, %v86
      %v89 = vld [vmem:[#allocation2] sm:$0xff]
      %v90 = vmul.f32 %v42, %v42
      %v91 = vmul.f32 %v43, %v43
      %v92 = vmul.f32 %v44, %v44
      %v93 = vmul.f32 %v45, %v45
      %v98 = vcombine.low %v90, %v91
      %v99 = vcombine.low %v92, %v93
      %v101 = vunpack.c.l.s4 1983009808
      %v102 = vunpack.c.0.s8 %v101
      %v103 = vlaneseq
      %v104 = vshrl.u32 %v103, 7
      %v105 = vsub.s32 %v102, %v104
      %v106 = vrot.slane %v98, %v105
      %v108 = vunpack.c.l.s4 1983009808
      %v109 = vunpack.c.0.s8 %v108
      %v110 = vlaneseq
      %v111 = vshrl.u32 %v110, 7
      %v112 = vsub.s32 %v109, %v111
      %v113 = vrot.slane %v99, %v112
      %v114 = vcombine.low %v106, %v113
      %v115 = vcombine.high %v106, %v113
      %v118 = vadd.f32 %v114, %v115
      %119 = vadd.xlane.f32.xlu0 %v118
      %v120 = vpop.xlane.xlu0 %119
      %v121 = vadd.f32 %v89, %v120
      %vm122 = vcmask 15368
      %123 = vst.msk [vmem:[#allocation2] sm:$0xff] %vm122, %v121
      %v124 = vld [vmem:[#allocation2] sm:$0xff]
      %v129 = vcombine.low %v46, %v47
      %v130 = vcombine.low %v48, %v49
      %v132 = vunpack.c.l.s4 1983009808
      %v133 = vunpack.c.0.s8 %v132
      %v134 = vlaneseq
      %v135 = vshrl.u32 %v134, 7
      %v136 = vsub.s32 %v133, %v135
      %v137 = vrot.slane %v129, %v136
      %v139 = vunpack.c.l.s4 1983009808
      %v140 = vunpack.c.0.s8 %v139
      %v141 = vlaneseq
      %v142 = vshrl.u32 %v141, 7
      %v143 = vsub.s32 %v140, %v142
      %v144 = vrot.slane %v130, %v143
      %v145 = vcombine.low %v137, %v144
      %v146 = vcombine.high %v137, %v144
      %v149 = vadd.f32 %v145, %v146
      %150 = vadd.xlane.f32.xlu0 %v149
      %v151 = vpop.xlane.xlu0 %150
      %v152 = vadd.f32 %v124, %v151
      %vm153 = vcmask 23568
      %154 = vst.msk [vmem:[#allocation2] sm:$0xff] %vm153, %v152
      %v155 = vld [vmem:[#allocation2] sm:$0xff]
      %v156 = vmul.f32 %v46, %v46
      %v157 = vmul.f32 %v47, %v47
      %v158 = vmul.f32 %v48, %v48
      %v159 = vmul.f32 %v49, %v49
      %v164 = vcombine.low %v156, %v157
      %v165 = vcombine.low %v158, %v159
      %v167 = vunpack.c.l.s4 1983009808
      %v168 = vunpack.c.0.s8 %v167
      %v169 = vlaneseq
      %v170 = vshrl.u32 %v169, 7
      %v171 = vsub.s32 %v168, %v170
      %v172 = vrot.slane %v164, %v171
      %v174 = vunpack.c.l.s4 1983009808
      %v175 = vunpack.c.0.s8 %v174
      %v176 = vlaneseq
      %v177 = vshrl.u32 %v176, 7
      %v178 = vsub.s32 %v175, %v177
      %v179 = vrot.slane %v165, %v178
      %v180 = vcombine.low %v172, %v179
      %v181 = vcombine.high %v172, %v179
      %v184 = vadd.f32 %v180, %v181
      %185 = vadd.xlane.f32.xlu0 %v184
      %v186 = vpop.xlane.xlu0 %185
      %v187 = vadd.f32 %v155, %v186
      %vm188 = vcmask 31768
      %189 = vst.msk [vmem:[#allocation2] sm:$0xff] %vm188, %v187
      %v190 = vld [vmem:[#allocation2] sm:$0xff]
      %v191 = vmul.f32 %v46, %v42
      %v192 = vmul.f32 %v47, %v43
      %v193 = vmul.f32 %v48, %v44
      %v194 = vmul.f32 %v49, %v45
      %v199 = vcombine.low %v191, %v192
      %v200 = vcombine.low %v193, %v194
      %v202 = vunpack.c.l.s4 1983009808
      %v203 = vunpack.c.0.s8 %v202
      %v204 = vlaneseq
      %v205 = vshrl.u32 %v204, 7
      %v206 = vsub.s32 %v203, %v205
      %v207 = vrot.slane %v199, %v206
      %v209 = vunpack.c.l.s4 1983009808
      %v210 = vunpack.c.0.s8 %v209
      %v211 = vlaneseq
      %v212 = vshrl.u32 %v211, 7
      %v213 = vsub.s32 %v210, %v212
      %v214 = vrot.slane %v200, %v213
      %v215 = vcombine.low %v207, %v214
      %v216 = vcombine.high %v207, %v214
      %v219 = vadd.f32 %v215, %v216
      %220 = vadd.xlane.f32.xlu0 %v219
      %v221 = vpop.xlane.xlu0 %220
      %v222 = vadd.f32 %v190, %v221
      %vm223 = vcmask 39968
      %224 = vst.msk [vmem:[#allocation2] sm:$0xff] %vm223, %v222
      %v225 = vld [vmem:[#allocation2] sm:$0xff]
      %v230 = vcombine.low %v50, %v51
      %v231 = vcombine.low %v52, %v53
      %v233 = vunpack.c.l.s4 1983009808
      %v234 = vunpack.c.0.s8 %v233
      %v235 = vlaneseq
      %v236 = vshrl.u32 %v235, 7
      %v237 = vsub.s32 %v234, %v236
      %v238 = vrot.slane %v230, %v237
      %v240 = vunpack.c.l.s4 1983009808
      %v241 = vunpack.c.0.s8 %v240
      %v242 = vlaneseq
      %v243 = vshrl.u32 %v242, 7
      %v244 = vsub.s32 %v241, %v243
      %v245 = vrot.slane %v231, %v244
      %v246 = vcombine.low %v238, %v245
      %v247 = vcombine.high %v238, %v245
      %v250 = vadd.f32 %v246, %v247
      %251 = vadd.xlane.f32.xlu0 %v250
      %v252 = vpop.xlane.xlu0 %251
      %v253 = vadd.f32 %v225, %v252
      %vm254 = vcmask 48168
      %255 = vst.msk [vmem:[#allocation2] sm:$0xff] %vm254, %v253
      %v256 = vld [vmem:[#allocation2] sm:$0xff]
      %v257 = vmul.f32 %v50, %v50
      %v258 = vmul.f32 %v51, %v51
      %v259 = vmul.f32 %v52, %v52
      %v260 = vmul.f32 %v53, %v53
      %v265 = vcombine.low %v257, %v258
      %v266 = vcombine.low %v259, %v260
      %v268 = vunpack.c.l.s4 1983009808
      %v269 = vunpack.c.0.s8 %v268
      %v270 = vlaneseq
      %v271 = vshrl.u32 %v270, 7
      %v272 = vsub.s32 %v269, %v271
      %v273 = vrot.slane %v265, %v272
      %v275 = vunpack.c.l.s4 1983009808
      %v276 = vunpack.c.0.s8 %v275
      %v277 = vlaneseq
      %v278 = vshrl.u32 %v277, 7
      %v279 = vsub.s32 %v276, %v278
      %v280 = vrot.slane %v266, %v279
      %v281 = vcombine.low %v273, %v280
      %v282 = vcombine.high %v273, %v280
      %v285 = vadd.f32 %v281, %v282
      %286 = vadd.xlane.f32.xlu0 %v285
      %v287 = vpop.xlane.xlu0 %286
      %v288 = vadd.f32 %v256, %v287
      %vm289 = vcmask 56368
      %290 = vst.msk [vmem:[#allocation2] sm:$0xff] %vm289, %v288
      %v291 = vld [vmem:[#allocation2] sm:$0xff]
      %v292 = vmul.f32 %v50, %v42
      %v293 = vmul.f32 %v51, %v43
      %v294 = vmul.f32 %v52, %v44
      %v295 = vmul.f32 %v53, %v45
      %v300 = vcombine.low %v292, %v293
      %v301 = vcombine.low %v294, %v295
      %v303 = vunpack.c.l.s4 1983009808
      %v304 = vunpack.c.0.s8 %v303
      %v305 = vlaneseq
      %v306 = vshrl.u32 %v305, 7
      %v307 = vsub.s32 %v304, %v306
      %v308 = vrot.slane %v300, %v307
      %v310 = vunpack.c.l.s4 1983009808
      %v311 = vunpack.c.0.s8 %v310
      %v312 = vlaneseq
      %v313 = vshrl.u32 %v312, 7
      %v314 = vsub.s32 %v311, %v313
      %v315 = vrot.slane %v301, %v314
      %v316 = vcombine.low %v308, %v315
      %v317 = vcombine.high %v308, %v315
      %v320 = vadd.f32 %v316, %v317
      %321 = vadd.xlane.f32.xlu0 %v320
      %v322 = vpop.xlane.xlu0 %321
      %v323 = vadd.f32 %v291, %v322
      %vm324 = vcmask 64568
      %325 = vst.msk [vmem:[#allocation2] sm:$0xff] %vm324, %v323
      %v326 = vld [vmem:[#allocation2] sm:$0xff]
      %v331 = vcombine.low %v54, %v55
      %v332 = vcombine.low %v56, %v57
      %v334 = vunpack.c.l.s4 1983009808
      %v335 = vunpack.c.0.s8 %v334
      %v336 = vlaneseq
      %v337 = vshrl.u32 %v336, 7
      %v338 = vsub.s32 %v335, %v337
      %v339 = vrot.slane %v331, %v338
      %v341 = vunpack.c.l.s4 1983009808
      %v342 = vunpack.c.0.s8 %v341
      %v343 = vlaneseq
      %v344 = vshrl.u32 %v343, 7
      %v345 = vsub.s32 %v342, %v344
      %v346 = vrot.slane %v332, %v345
      %v347 = vcombine.low %v339, %v346
      %v348 = vcombine.high %v339, %v346
      %v351 = vadd.f32 %v347, %v348
      %352 = vadd.xlane.f32.xlu0 %v351
      %v353 = vpop.xlane.xlu0 %352
      %v354 = vadd.f32 %v326, %v353
      %vm355 = vcmask 72768
      %356 = vst.msk [vmem:[#allocation2] sm:$0xff] %vm355, %v354
      %v357 = vld [vmem:[#allocation2] sm:$0xff]
      %v358 = vmul.f32 %v54, %v54
      %v359 = vmul.f32 %v55, %v55
      %v360 = vmul.f32 %v56, %v56
      %v361 = vmul.f32 %v57, %v57
      %v366 = vcombine.low %v358, %v359
      %v367 = vcombine.low %v360, %v361
      %v369 = vunpack.c.l.s4 1983009808
      %v370 = vunpack.c.0.s8 %v369
      %v371 = vlaneseq
      %v372 = vshrl.u32 %v371, 7
      %v373 = vsub.s32 %v370, %v372
      %v374 = vrot.slane %v366, %v373
      %v376 = vunpack.c.l.s4 1983009808
      %v377 = vunpack.c.0.s8 %v376
      %v378 = vlaneseq
      %v379 = vshrl.u32 %v378, 7
      %v380 = vsub.s32 %v377, %v379
      %v381 = vrot.slane %v367, %v380
      %v382 = vcombine.low %v374, %v381
      %v383 = vcombine.high %v374, %v381
      %v386 = vadd.f32 %v382, %v383
      %387 = vadd.xlane.f32.xlu0 %v386
      %v388 = vpop.xlane.xlu0 %387
      %v389 = vadd.f32 %v357, %v388
      %vm390 = vcmask 80968
      %391 = vst.msk [vmem:[#allocation2] sm:$0xff] %vm390, %v389
      %v392 = vld [vmem:[#allocation2] sm:$0xff]
      %v393 = vmul.f32 %v54, %v42
      %v394 = vmul.f32 %v55, %v43
      %v395 = vmul.f32 %v56, %v44
      %v396 = vmul.f32 %v57, %v45
      %v401 = vcombine.low %v393, %v394
      %v402 = vcombine.low %v395, %v396
      %v404 = vunpack.c.l.s4 1983009808
      %v405 = vunpack.c.0.s8 %v404
      %v406 = vlaneseq
      %v407 = vshrl.u32 %v406, 7
      %v408 = vsub.s32 %v405, %v407
      %v409 = vrot.slane %v401, %v408
      %v411 = vunpack.c.l.s4 1983009808
      %v412 = vunpack.c.0.s8 %v411
      %v413 = vlaneseq
      %v414 = vshrl.u32 %v413, 7
      %v415 = vsub.s32 %v412, %v414
      %v416 = vrot.slane %v402, %v415
      %v417 = vcombine.low %v409, %v416
      %v418 = vcombine.high %v409, %v416
      %v421 = vadd.f32 %v417, %v418
      %422 = vadd.xlane.f32.xlu0 %v421
      %v423 = vpop.xlane.xlu0 %422
      %v424 = vadd.f32 %v392, %v423
      %vm425 = vcmask 89168
      %426 = vst.msk [vmem:[#allocation2] sm:$0xff] %vm425, %v424
    $region37: #{tpu_custom_call.1} parent=1 // pred_fallthru
      _
    %p427 = scmp.gt.s32.totalorder %s36, %s37
    // Predicated region
    $region38: #{tpu_custom_call.1} parent=1 // pred_check
      %p428 = pneg %p427
    $region39: #{tpu_custom_call.1} parent=1 // pred_check_branch
      %430 = sbr.rel (%p428) target = $region41
    $region40: #{tpu_custom_call.1} parent=1 // pred_region
      %v431 = vld [vmem:[%s6] sm:$0xff]
      %s432 = smul.u32 0, 256
      %v433 = vstv %s432
      %v434 = vsub.s32 %v431, %v433
      %v435 = vlaneseq
      %v436 = vand.u32 %v435, 127
      %v437 = vadd.s32 %v436, 128
      %438 = vset.pattern.permute.xlu0 0
      %439 = vperm.xlu0 %438, %v434
      %v440 = vpop.permute.xlu0 %439
      %vm441 = vcmp.lt.s32.totalorder %v436, %v440
      %vm442 = vcmp.lt.s32.totalorder %v437, %v440
      %v443 = vld [vmem:[%s4] sm:$0xf]
      %v444 = vld [vmem:[%s4 + $0x4] sm:$0xf]
      %v445 = vld [vmem:[%s4 + $0x8] sm:$0xf]
      %v446 = vld [vmem:[%s4 + $0xc] sm:$0xf]
      %v451 = vcombine.low %v443, %v444
      %v452 = vcombine.low %v445, %v446
      %v454 = vunpack.c.l.s4 1983009808
      %v455 = vunpack.c.0.s8 %v454
      %v456 = vlaneseq
      %v457 = vshrl.u32 %v456, 7
      %v458 = vsub.s32 %v455, %v457
      %v459 = vrot.slane %v451, %v458
      %v461 = vunpack.c.l.s4 1983009808
      %v462 = vunpack.c.0.s8 %v461
      %v463 = vlaneseq
      %v464 = vshrl.u32 %v463, 7
      %v465 = vsub.s32 %v462, %v464
      %v466 = vrot.slane %v452, %v465
      %v467 = vcombine.low %v459, %v466
      %v468 = vcombine.high %v459, %v466
      %v471 = vsel %vm441, %v467, 0.0
      %v472 = vsel %vm442, %v468, 0.0
      %v473 = vld [vmem:[%s1] sm:$0xf]
      %v474 = vld [vmem:[%s1 + $0x4] sm:$0xf]
      %v475 = vld [vmem:[%s1 + $0x8] sm:$0xf]
      %v476 = vld [vmem:[%s1 + $0xc] sm:$0xf]
      %v481 = vcombine.low %v473, %v474
      %v482 = vcombine.low %v475, %v476
      %v484 = vunpack.c.l.s4 1983009808
      %v485 = vunpack.c.0.s8 %v484
      %v486 = vlaneseq
      %v487 = vshrl.u32 %v486, 7
      %v488 = vsub.s32 %v485, %v487
      %v489 = vrot.slane %v481, %v488
      %v491 = vunpack.c.l.s4 1983009808
      %v492 = vunpack.c.0.s8 %v491
      %v493 = vlaneseq
      %v494 = vshrl.u32 %v493, 7
      %v495 = vsub.s32 %v492, %v494
      %v496 = vrot.slane %v482, %v495
      %v497 = vcombine.low %v489, %v496
      %v498 = vcombine.high %v489, %v496
      %v501 = vsel %vm441, %v497, 0.0
      %v502 = vsel %vm442, %v498, 0.0
      %v503 = vld [vmem:[%s2] sm:$0xf]
      %v504 = vld [vmem:[%s2 + $0x4] sm:$0xf]
      %v505 = vld [vmem:[%s2 + $0x8] sm:$0xf]
      %v506 = vld [vmem:[%s2 + $0xc] sm:$0xf]
      %v511 = vcombine.low %v503, %v504
      %v512 = vcombine.low %v505, %v506
      %v514 = vunpack.c.l.s4 1983009808
      %v515 = vunpack.c.0.s8 %v514
      %v516 = vlaneseq
      %v517 = vshrl.u32 %v516, 7
      %v518 = vsub.s32 %v515, %v517
      %v519 = vrot.slane %v511, %v518
      %v521 = vunpack.c.l.s4 1983009808
      %v522 = vunpack.c.0.s8 %v521
      %v523 = vlaneseq
      %v524 = vshrl.u32 %v523, 7
      %v525 = vsub.s32 %v522, %v524
      %v526 = vrot.slane %v512, %v525
      %v527 = vcombine.low %v519, %v526
      %v528 = vcombine.high %v519, %v526
      %v531 = vsel %vm441, %v527, 0.0
      %v532 = vsel %vm442, %v528, 0.0
      %v533 = vld [vmem:[%s3] sm:$0xf]
      %v534 = vld [vmem:[%s3 + $0x4] sm:$0xf]
      %v535 = vld [vmem:[%s3 + $0x8] sm:$0xf]
      %v536 = vld [vmem:[%s3 + $0xc] sm:$0xf]
      %v541 = vcombine.low %v533, %v534
      %v542 = vcombine.low %v535, %v536
      %v544 = vunpack.c.l.s4 1983009808
      %v545 = vunpack.c.0.s8 %v544
      %v546 = vlaneseq
      %v547 = vshrl.u32 %v546, 7
      %v548 = vsub.s32 %v545, %v547
      %v549 = vrot.slane %v541, %v548
      %v551 = vunpack.c.l.s4 1983009808
      %v552 = vunpack.c.0.s8 %v551
      %v553 = vlaneseq
      %v554 = vshrl.u32 %v553, 7
      %v555 = vsub.s32 %v552, %v554
      %v556 = vrot.slane %v542, %v555
      %v557 = vcombine.low %v549, %v556
      %v558 = vcombine.high %v549, %v556
      %v561 = vsel %vm441, %v557, 0.0
      %v562 = vsel %vm442, %v558, 0.0
      %v563 = vld [vmem:[#allocation2] sm:$0xff]
      %v564 = vadd.f32 %v471, %v472
      %565 = vadd.xlane.f32.xlu0 %v564
      %v566 = vpop.xlane.xlu0 %565
      %v567 = vadd.f32 %v563, %v566
      %vm568 = vcmask 7168
      %569 = vst.msk [vmem:[#allocation2] sm:$0xff] %vm568, %v567
      %v570 = vld [vmem:[#allocation2] sm:$0xff]
      %v571 = vmul.f32 %v471, %v471
      %v572 = vmul.f32 %v472, %v472
      %v573 = vadd.f32 %v571, %v572
      %574 = vadd.xlane.f32.xlu0 %v573
      %v575 = vpop.xlane.xlu0 %574
      %v576 = vadd.f32 %v570, %v575
      %vm577 = vcmask 15368
      %578 = vst.msk [vmem:[#allocation2] sm:$0xff] %vm577, %v576
      %v579 = vld [vmem:[#allocation2] sm:$0xff]
      %v580 = vadd.f32 %v501, %v502
      %581 = vadd.xlane.f32.xlu0 %v580
      %v582 = vpop.xlane.xlu0 %581
      %v583 = vadd.f32 %v579, %v582
      %vm584 = vcmask 23568
      %585 = vst.msk [vmem:[#allocation2] sm:$0xff] %vm584, %v583
      %v586 = vld [vmem:[#allocation2] sm:$0xff]
      %v587 = vmul.f32 %v501, %v501
      %v588 = vmul.f32 %v502, %v502
      %v589 = vadd.f32 %v587, %v588
      %590 = vadd.xlane.f32.xlu0 %v589
      %v591 = vpop.xlane.xlu0 %590
      %v592 = vadd.f32 %v586, %v591
      %vm593 = vcmask 31768
      %594 = vst.msk [vmem:[#allocation2] sm:$0xff] %vm593, %v592
      %v595 = vld [vmem:[#allocation2] sm:$0xff]
      %v596 = vmul.f32 %v501, %v471
      %v597 = vmul.f32 %v502, %v472
      %v598 = vadd.f32 %v596, %v597
      %599 = vadd.xlane.f32.xlu0 %v598
      %v600 = vpop.xlane.xlu0 %599
      %v601 = vadd.f32 %v595, %v600
      %vm602 = vcmask 39968
      %603 = vst.msk [vmem:[#allocation2] sm:$0xff] %vm602, %v601
      %v604 = vld [vmem:[#allocation2] sm:$0xff]
      %v605 = vadd.f32 %v531, %v532
      %606 = vadd.xlane.f32.xlu0 %v605
      %v607 = vpop.xlane.xlu0 %606
      %v608 = vadd.f32 %v604, %v607
      %vm609 = vcmask 48168
      %610 = vst.msk [vmem:[#allocation2] sm:$0xff] %vm609, %v608
      %v611 = vld [vmem:[#allocation2] sm:$0xff]
      %v612 = vmul.f32 %v531, %v531
      %v613 = vmul.f32 %v532, %v532
      %v614 = vadd.f32 %v612, %v613
      %615 = vadd.xlane.f32.xlu0 %v614
      %v616 = vpop.xlane.xlu0 %615
      %v617 = vadd.f32 %v611, %v616
      %vm618 = vcmask 56368
      %619 = vst.msk [vmem:[#allocation2] sm:$0xff] %vm618, %v617
      %v620 = vld [vmem:[#allocation2] sm:$0xff]
      %v621 = vmul.f32 %v531, %v471
      %v622 = vmul.f32 %v532, %v472
      %v623 = vadd.f32 %v621, %v622
      %624 = vadd.xlane.f32.xlu0 %v623
      %v625 = vpop.xlane.xlu0 %624
      %v626 = vadd.f32 %v620, %v625
      %vm627 = vcmask 64568
      %628 = vst.msk [vmem:[#allocation2] sm:$0xff] %vm627, %v626
      %v629 = vld [vmem:[#allocation2] sm:$0xff]
      %v630 = vadd.f32 %v561, %v562
      %631 = vadd.xlane.f32.xlu0 %v630
      %v632 = vpop.xlane.xlu0 %631
      %v633 = vadd.f32 %v629, %v632
      %vm634 = vcmask 72768
      %635 = vst.msk [vmem:[#allocation2] sm:$0xff] %vm634, %v633
      %v636 = vld [vmem:[#allocation2] sm:$0xff]
      %v637 = vmul.f32 %v561, %v561
      %v638 = vmul.f32 %v562, %v562
      %v639 = vadd.f32 %v637, %v638
      %640 = vadd.xlane.f32.xlu0 %v639
      %v641 = vpop.xlane.xlu0 %640
      %v642 = vadd.f32 %v636, %v641
      %vm643 = vcmask 80968
      %644 = vst.msk [vmem:[#allocation2] sm:$0xff] %vm643, %v642
      %v645 = vld [vmem:[#allocation2] sm:$0xff]
      %v646 = vmul.f32 %v561, %v471
      %v647 = vmul.f32 %v562, %v472
      %v648 = vadd.f32 %v646, %v647
      %649 = vadd.xlane.f32.xlu0 %v648
      %v650 = vpop.xlane.xlu0 %649
      %v651 = vadd.f32 %v645, %v650
      %vm652 = vcmask 89168
      %653 = vst.msk [vmem:[#allocation2] sm:$0xff] %vm652, %v651
    $region41: #{tpu_custom_call.1} parent=1 // pred_fallthru
      _
    // Predicated region
    $region42: #{tpu_custom_call.1} parent=1 // pred_check
      %p654 = pneg %p29
    $region43: #{tpu_custom_call.1} parent=1 // pred_check_branch
      %656 = sbr.rel (%p654) target = $region45
    $region44: #{tpu_custom_call.1} parent=1 // pred_region
      %v657 = vld [vmem:[#allocation2] sm:$0xff]
      %v658 = vmul.f32 %v657, %v657
      %v659 = vmul.f32 %v658, 0.00390625
      %661 = vrot.lane.b32.xlu0 %v659, 1
      %v662 = vpop.permute.xlu0 %661
      %v664 = vsub.f32 %v657, %v662
      %v665 = vadd.f32 %v664, 1e-08
      %v666 = vrcp.pop %v665
      %v667 = vmul.f32 1.0, %v666
      %669 = vrot.lane.b32.xlu0 %v657, 2
      %v670 = vpop.permute.xlu0 %669
      %v672 = vmul.f32 %v657, %v670
      %v673 = vmul.f32 %v672, 0.00390625
      %675 = vrot.lane.b32.xlu0 %v673, 2
      %v676 = vpop.permute.xlu0 %675
      %v678 = vsub.f32 %v657, %v676
      %v679 = vmul.f32 %v678, %v678
      %681 = vrot.lane.b32.xlu0 %v664, 3
      %v682 = vpop.permute.xlu0 %681
      %v684 = vmul.f32 %v679, %v682
      %686 = vrot.lane.b32.xlu0 %v667, 3
      %v687 = vpop.permute.xlu0 %686
      %v689 = vmul.f32 %v684, %v687
      %v690 = vmul.f32 %v689, %v687
      %v691 = vmul.f32 %v679, 2.0
      %v692 = vmul.f32 %v691, %v687
      %694 = vrot.lane.b32.xlu0 %v692, 127
      %v695 = vpop.permute.xlu0 %694
      %v697 = vsub.f32 %v664, %v695
      %699 = vrot.lane.b32.xlu0 %v690, 127
      %v700 = vpop.permute.xlu0 %699
      %v702 = vadd.f32 %v697, %v700
      %v703 = vmax.f32 %v690, 0.0
      %v704 = vrsqrt.pop %v703
      %v705 = vmul.f32 %v703, %v704
      %vm706 = vcmp.eq.f32.partialorder %v703, inf
      %v707 = vsel %vm706, %v703, %v705
      %vm708 = vcmp.eq.f32.partialorder %v703, 0.0
      %v709 = vand.u32 %v703, 2147483648
      %v710 = vsel %vm708, %v709, %v707
      %v711 = vmax.f32 %v702, 0.0
      %v712 = vrsqrt.pop %v711
      %v713 = vmul.f32 %v711, %v712
      %vm714 = vcmp.eq.f32.partialorder %v711, inf
      %v715 = vsel %vm714, %v711, %v713
      %vm716 = vcmp.eq.f32.partialorder %v711, 0.0
      %v717 = vand.u32 %v711, 2147483648
      %v718 = vsel %vm716, %v717, %v715
      %v719 = vadd.f32 %v718, 1e-08
      %721 = vrot.lane.b32.xlu0 %v719, 1
      %v722 = vpop.permute.xlu0 %721
      %v724 = vrcp.pop %v722
      %v725 = vmul.f32 %v710, %v724
      %v726 = vadd.f32 %v725, 1e-08
      %v727 = vlog2.pop %v726
      %v728 = vmul.f32 %v727, 0.6931472
      %v729 = vmul.f32 %v728, 0.4342945
      %v730 = vmul.f32 %v729, 20.0
      %731 = vrot.lane.b32.xlu0 %v657, 5
      %v732 = vpop.permute.xlu0 %731
      %v734 = vmul.f32 %v657, %v732
      %v735 = vmul.f32 %v734, 0.00390625
      %737 = vrot.lane.b32.xlu0 %v735, 2
      %v738 = vpop.permute.xlu0 %737
      %v740 = vsub.f32 %v657, %v738
      %v741 = vmul.f32 %v740, %v740
      %742 = vrot.lane.b32.xlu0 %v664, 6
      %v743 = vpop.permute.xlu0 %742
      %v745 = vmul.f32 %v741, %v743
      %746 = vrot.lane.b32.xlu0 %v667, 6
      %v747 = vpop.permute.xlu0 %746
      %v749 = vmul.f32 %v745, %v747
      %v750 = vmul.f32 %v749, %v747
      %v751 = vmul.f32 %v741, 2.0
      %v752 = vmul.f32 %v751, %v747
      %754 = vrot.lane.b32.xlu0 %v752, 127
      %v755 = vpop.permute.xlu0 %754
      %v757 = vsub.f32 %v664, %v755
      %759 = vrot.lane.b32.xlu0 %v750, 127
      %v760 = vpop.permute.xlu0 %759
      %v762 = vadd.f32 %v757, %v760
      %v763 = vmax.f32 %v750, 0.0
      %v764 = vrsqrt.pop %v763
      %v765 = vmul.f32 %v763, %v764
      %vm766 = vcmp.eq.f32.partialorder %v763, inf
      %v767 = vsel %vm766, %v763, %v765
      %vm768 = vcmp.eq.f32.partialorder %v763, 0.0
      %v769 = vand.u32 %v763, 2147483648
      %v770 = vsel %vm768, %v769, %v767
      %v771 = vmax.f32 %v762, 0.0
      %v772 = vrsqrt.pop %v771
      %v773 = vmul.f32 %v771, %v772
      %vm774 = vcmp.eq.f32.partialorder %v771, inf
      %v775 = vsel %vm774, %v771, %v773
      %vm776 = vcmp.eq.f32.partialorder %v771, 0.0
      %v777 = vand.u32 %v771, 2147483648
      %v778 = vsel %vm776, %v777, %v775
      %v779 = vadd.f32 %v778, 1e-08
      %781 = vrot.lane.b32.xlu0 %v779, 1
      %v782 = vpop.permute.xlu0 %781
      %v784 = vrcp.pop %v782
      %v785 = vmul.f32 %v770, %v784
      %v786 = vadd.f32 %v785, 1e-08
      %v787 = vlog2.pop %v786
      %v788 = vmul.f32 %v787, 0.6931472
      %v789 = vmul.f32 %v788, 0.4342945
      %v790 = vmul.f32 %v789, 20.0
      %791 = vrot.lane.b32.xlu0 %v657, 8
      %v792 = vpop.permute.xlu0 %791
      %v794 = vmul.f32 %v657, %v792
      %v795 = vmul.f32 %v794, 0.00390625
      %797 = vrot.lane.b32.xlu0 %v795, 2
      %v798 = vpop.permute.xlu0 %797
      %v800 = vsub.f32 %v657, %v798
      %v801 = vmul.f32 %v800, %v800
      %802 = vrot.lane.b32.xlu0 %v664, 9
      %v803 = vpop.permute.xlu0 %802
      %v805 = vmul.f32 %v801, %v803
      %806 = vrot.lane.b32.xlu0 %v667, 9
      %v807 = vpop.permute.xlu0 %806
      %v809 = vmul.f32 %v805, %v807
      %v810 = vmul.f32 %v809, %v807
      %v811 = vmul.f32 %v801, 2.0
      %v812 = vmul.f32 %v811, %v807
      %814 = vrot.lane.b32.xlu0 %v812, 127
      %v815 = vpop.permute.xlu0 %814
      %v817 = vsub.f32 %v664, %v815
      %819 = vrot.lane.b32.xlu0 %v810, 127
      %v820 = vpop.permute.xlu0 %819
      %v822 = vadd.f32 %v817, %v820
      %v823 = vmax.f32 %v810, 0.0
      %v824 = vrsqrt.pop %v823
      %v825 = vmul.f32 %v823, %v824
      %vm826 = vcmp.eq.f32.partialorder %v823, inf
      %v827 = vsel %vm826, %v823, %v825
      %vm828 = vcmp.eq.f32.partialorder %v823, 0.0
      %v829 = vand.u32 %v823, 2147483648
      %v830 = vsel %vm828, %v829, %v827
      %v831 = vmax.f32 %v822, 0.0
      %v832 = vrsqrt.pop %v831
      %v833 = vmul.f32 %v831, %v832
      %vm834 = vcmp.eq.f32.partialorder %v831, inf
      %v835 = vsel %vm834, %v831, %v833
      %vm836 = vcmp.eq.f32.partialorder %v831, 0.0
      %v837 = vand.u32 %v831, 2147483648
      %v838 = vsel %vm836, %v837, %v835
      %v839 = vadd.f32 %v838, 1e-08
      %841 = vrot.lane.b32.xlu0 %v839, 1
      %v842 = vpop.permute.xlu0 %841
      %v844 = vrcp.pop %v842
      %v845 = vmul.f32 %v830, %v844
      %v846 = vadd.f32 %v845, 1e-08
      %v847 = vlog2.pop %v846
      %v848 = vmul.f32 %v847, 0.6931472
      %v849 = vmul.f32 %v848, 0.4342945
      %v850 = vmul.f32 %v849, 20.0
      %v851 = vld [vmem:[%s5] sm:$0xff]
      %vm852 = vcmask 80896
      %v853 = vsel %vm852, %v851, -inf
      %854 = vmax.xlane.f32.xlu0 %v853
      %v855 = vpop.xlane.xlu0 %854
      %v856 = vsub.f32 %v851, %v855
      %v857 = vmul.f32 %v856, 1.442695
      %v858 = vpow.pop %v857
      %v859 = vsel %vm852, %v858, 0.0
      %860 = vadd.xlane.f32.xlu0 %v859
      %v861 = vpop.xlane.xlu0 %860
      %v862 = vlog2.pop %v861
      %v863 = vmul.f32 %v862, 0.6931472
      %v864 = vld [vmem:[%s7] sm:$0xff]
      %v865 = vlaneseq
      %v866 = vand.u32 %v865, 127
      %867 = vset.pattern.permute.xlu0 0
      %868 = vperm.xlu0 %867, %v864
      %v869 = vpop.permute.xlu0 %868
      %vm870 = vcmp.eq.s32.totalorder %v866, %v869
      %v871 = vsel %vm870, 1, 0
      %v872 = vcvt.s32.f32 %v871
      %v873 = vmul.f32 %v856, %v872
      %v874 = vsel %vm852, %v873, 0.0
      %875 = vadd.xlane.f32.xlu0 %v874
      %v876 = vpop.xlane.xlu0 %875
      %v877 = vsub.f32 %v863, %v876
      %vm878 = vcmp.eq.f32.partialorder %v851, %v855
      %v879 = vsel %vm878, %v866, 10
      %v880 = vsel %vm852, %v879, 2147483647
      %v881 = vand.u32 %v880, 65535
      %v882 = vshra.s32 %v880, 16
      %v883 = vcvt.s32.f32 %v881
      %v884 = vcvt.s32.f32 %v882
      %885 = vmin.xlane.f32.xlu0 %v884
      %v886 = vpop.xlane.xlu0 %885
      %vm887 = vcmp.eq.f32.partialorder %v884, %v886
      %v888 = vsel %vm887, %v883, inf
      %889 = vmin.xlane.f32.xlu0 %v888
      %v890 = vpop.xlane.xlu0 %889
      %v891 = vcvt.f32.s32 %v890
      %v892 = vcvt.f32.s32 %v886
      %v893 = vshll.u32 %v892, 16
      %v894 = vadd.s32 %v893, %v891
      %vm895 = vcmp.eq.s32.totalorder %v894, %v864
      %v896 = vsel %vm895, 1, 0
      %v897 = vcvt.s32.f32 %v896
      %899 = vrot.lane.b32.xlu0 %v730, 124
      %v900 = vpop.permute.xlu0 %899
      %903 = vrot.lane.b32.xlu0 %v790, 122
      %v904 = vpop.permute.xlu0 %903
      %907 = vrot.lane.b32.xlu0 %v850, 120
      %v908 = vpop.permute.xlu0 %907
      %911 = vrot.lane.b32.xlu0 %v897, 4
      %v912 = vpop.permute.xlu0 %911
      %vm914 = vcmask 7168
      %v915 = vsel %vm914, %v900, %v904
      %vm916 = vcmask 15360
      %v917 = vsel %vm916, %v915, %v908
      %vm918 = vcmask 23552
      %v919 = vsel %vm918, %v917, %v877
      %vm920 = vcmask 31744
      %v921 = vsel %vm920, %v919, %v912
      %vm922 = vcmask 39936
      %v923 = vsel %vm922, %v921, 0.0
      %vm924 = vcmask 64512
      %925 = vst.msk [vmem:[#allocation5] sm:$0xff] %vm924, %v923
    $region45: #{tpu_custom_call.1} parent=1 // pred_fallthru
      _
    // Predicated region
    $region46: #{tpu_custom_call.1} parent=1 // pred_check
      _
    $region47: #{tpu_custom_call.1} parent=1 // pred_check_branch
      %927 = sbr.rel (0) target = $region49
    $region48: #{tpu_custom_call.1} parent=1 // pred_region
      %s929 = ssub.s32 128, 32
      %930 = vsyncadd [#allocation6], %s929
      %s931 = sshll.u32 [#allocation5], 4
      %s932 = int_to_ptr.vmem [resolvable:$true] %s931
      %937 = dma.vmem_to_hbm [thread:$0]  %s932, 32, %s8, [#allocation6], 32, 32, 2
    $region49: #{tpu_custom_call.1} parent=1 // pred_fallthru
      _
    // Predicated region
    $region50: #{tpu_custom_call.1} parent=1 // pred_check
      _
    $region51: #{tpu_custom_call.1} parent=1 // pred_check_branch
      %939 = sbr.rel (0) target = $region53
    $region52: #{tpu_custom_call.1} parent=1 // pred_region
      %940 = dma.done [#allocation6], 128
    $region53: #{tpu_custom_call.1} parent=1 // pred_fallthru
      _
    %941 = vsyncpa [#allocation6], 1

</llo_original>
